<compile_context>
chip_gen: v5e
topology: v5e:2x2
jax: 0.10.0
libtpu: 0.0.40
codegen_flags: <defaults>
</compile_context>

<pallas_src>
import math

import jax
import jax.numpy as jnp
from jax.experimental import pallas as pl
from jax.experimental.pallas import tpu as pltpu  # noqa: F401  (TPU backend assumed)

# bf16 operands for every MXU matmul (f32 accumulation via preferred_element_type).
MXU_DTYPE = jnp.bfloat16


# ----------------------- in-kernel math helpers ------------------------------

def _layernorm(h, gamma, beta, eps):
    # Single-pass stats: the two cross-lane reductions are independent
    # (var = E[x^2] - E[x]^2), shortening the reduce->sub->reduce->rsqrt chain.
    mu = jnp.mean(h, axis=-1, keepdims=True)
    ms = jnp.mean(h * h, axis=-1, keepdims=True)
    var = jnp.maximum(ms - mu * mu, 0.0)
    return (h - mu) * jax.lax.rsqrt(var + eps) * gamma + beta


def _recip(y):
    # EUP approximate reciprocal + one Newton refinement -> fp32-accurate 1/y
    # while keeping the divide off the VALU slot.
    r = pl.reciprocal(y, approx=True)
    return r * (2.0 - y * r)


def _erf(x):
    # Abramowitz & Stegun 7.1.26 — fp32-accurate erf using only exp + reciprocal.
    # TODO(synk): try jax.lax.erf (verify lowering) to drop ~10 serialized VALU ops.
    a1, a2, a3, a4, a5 = 0.254829592, -0.284496736, 1.421413741, -1.453152027, 1.061405429
    p = 0.3275911
    sgn = jnp.where(x >= 0.0, 1.0, -1.0)
    ax = jnp.abs(x)
    t = _recip(1.0 + p * ax)
    poly = ((((a5 * t + a4) * t + a3) * t + a2) * t + a1) * t
    return sgn * (1.0 - poly * jnp.exp(-ax * ax))


def _gelu(x):
    return 0.5 * x * (1.0 + _erf(x * (1.0 / math.sqrt(2.0))))


# ----------------------------- fused Pallas kernel ----------------------------

def _make_fused_kernel(*, B, T, D, n_blocks, mxu_dtype):
    n1, n2 = n_blocks

    def kernel(x_ref, we_ref, posb_ref, eg_ref, eb_ref,
               ln1g_ref, ln1b_ref, ln2g_ref, ln2b_ref,
               w1_ref, b1_ref, w2_ref, b2_ref,
               pmg_ref, pmb_ref, pmw_ref, out_ref):
        f32 = jnp.float32

        # ---------------- ShotEmbedding: Linear + (pos+bias) + LN(eps=1e-12) --
        h = jnp.dot(x_ref[...], we_ref[...], preferred_element_type=f32)    # (B*T, D)
        # Broadcast add of (pos_emb + linear bias) over batch.  The reshape is a
        # free leading-dim split (T is a multiple of 8, lane dim unchanged).
        h = (h.reshape(B, T, D) + posb_ref[...]).reshape(B * T, D)
        h = _layernorm(h, eg_ref[...], eb_ref[...], 1e-12)
        # TODO(synk): nn.Dropout(p=0.1) is stochastic in training mode; modeled
        # as inference-mode identity.

        # ---------------- one SwinTransformerBlock ----------------------------
        def swin_block(h, l):
            # Residual(PreNorm(MHA)): the reference MHA returns its own input
            # (roll^-1 ∘ window_reverse ∘ window_partition ∘ roll == identity
            # when t == 2*window_size), so the sub-block is exactly LN1(h) + h.
            a = _layernorm(h, ln1g_ref[l], ln1b_ref[l], 1e-5) + h
            # Residual(PreNorm(FFN)): Linear(D,D) -> GELU -> Linear(D,D)
            z = _layernorm(a, ln2g_ref[l], ln2b_ref[l], 1e-5)
            z = jnp.dot(z.astype(mxu_dtype), w1_ref[l],
                        preferred_element_type=f32) + b1_ref[l]
            z = _gelu(z)
            z = jnp.dot(z.astype(mxu_dtype), w2_ref[l],
                        preferred_element_type=f32) + b2_ref[l]
            return z + a

        # ---------------- PatchMerging (shared params, used twice) ------------
        # rearrange 'b (p t) d -> b t (p d)', p=2, on batch-collapsed rows, then
        # ONE LayerNorm and ONE reduction matmul over all B*t/2 rows.
        def patch_merge(h, t):
            t2 = t // 2
            merged = jnp.concatenate(
                [jnp.concatenate([h[b * t: b * t + t2, :],
                                  h[b * t + t2: (b + 1) * t, :]], axis=-1)
                 for b in range(B)], axis=0)                                 # (B*t2, 2D)
            y = _layernorm(merged, pmg_ref[...], pmb_ref[...], 1e-5)
            return jnp.dot(y.astype(mxu_dtype), pmw_ref[...],
                           preferred_element_type=f32)                       # (B*t2, D)

        layer = 0
        for _ in range(n1):                       # stage 1: regular, shifted, ...
            h = swin_block(h, layer)
            layer += 1

        h = patch_merge(h, T)                     # PatchMerging #1: (B*T/2, D)

        for _ in range(n2):                       # stage 2
            h = swin_block(h, layer)
            layer += 1

        h = patch_merge(h, T // 2)                # PatchMerging #2: (B*T/4, D)
        out_ref[...] = h                          # direct, un-packed store

    return kernel


# ------------------------------ forward wrapper --------------------------------

def swin_transformer_crn_forward(x, params, cfg):
    B, T, IN = x.shape
    D = cfg["d_model"]
    n1, n2 = cfg["num_layers"]
    # Preconditions under which the attention sub-block reduces to the identity
    # (and the hard-coded n=2 in window_reverse type-checks).
    assert T == 2 * cfg["window_size"][0]
    assert T // 2 == 2 * cfg["window_size"][1]
    assert n1 % 2 == 0 and n2 % 2 == 0
    T4 = T // 4

    se, bk, pm = params["shot_embedding"], params["blocks"], params["patch_merging"]
    kernel = _make_fused_kernel(B=B, T=T, D=D, n_blocks=(n1, n2), mxu_dtype=MXU_DTYPE)

    # Fold the embedding-Linear bias into the positional embedding once.
    posb = se["pos"] + se["b"]                                   # (T, D), f32

    # Single gridless pallas_call: every operand is a whole-array VMEM ref
    # (single-buffered, no pipelining), total footprint < 100 KB.
    out = pl.pallas_call(
        kernel,
        out_shape=jax.ShapeDtypeStruct((B * T4, D), jnp.float32),
    )(x.reshape(B * T, IN).astype(MXU_DTYPE),
      se["w"].astype(MXU_DTYPE), posb, se["ln_g"], se["ln_b"],
      bk["ln1_g"], bk["ln1_b"], bk["ln2_g"], bk["ln2_b"],
      bk["w1"].astype(MXU_DTYPE), bk["b1"], bk["w2"].astype(MXU_DTYPE), bk["b2"],
      pm["ln_g"], pm["ln_b"], pm["w_red"].astype(MXU_DTYPE))
    return out.reshape(B, T4, D)


# ------------------------------ parameters -----------------------------------

def init_params(key, cfg):
    D, IN, T = cfg["d_model"], cfg["input_dim"], cfg["nn_size"]
    L = sum(cfg["num_layers"])                      # all blocks, both stages, stacked
    keys = iter(jax.random.split(key, 32))

    def nrm(shape, scale=0.02):
        return scale * jax.random.normal(next(keys), shape, jnp.float32)

    return {
        "shot_embedding": {
            "w": nrm((IN, D)), "b": nrm((1, D)), "pos": nrm((T, D)),
            "ln_g": jnp.ones((1, D), jnp.float32), "ln_b": jnp.zeros((1, D), jnp.float32),
        },
        "blocks": {  # stacked per-block params: index l = block id (stage1 then stage2)
            "ln1_g": jnp.ones((L, 1, D), jnp.float32), "ln1_b": jnp.zeros((L, 1, D), jnp.float32),
            "ln2_g": jnp.ones((L, 1, D), jnp.float32), "ln2_b": jnp.zeros((L, 1, D), jnp.float32),
            "w1": nrm((L, D, D)), "b1": nrm((L, 1, D)),
            "w2": nrm((L, D, D)), "b2": nrm((L, 1, D)),
            # w_qkv / w_o exist in the reference __init__ but are dead in its
            # forward pass (attention output is discarded) — kept only to
            # document shapes; not passed to the kernel.
            "w_qkv": nrm((L, D, 3 * D)), "b_qkv": jnp.zeros((L, 1, 3 * D), jnp.float32),
            "w_o": nrm((L, D, D)), "b_o": jnp.zeros((L, 1, D), jnp.float32),
        },
        # Single PatchMerging module reused for both merge calls in forward().
        "patch_merging": {
            "ln_g": jnp.ones((1, 2 * D), jnp.float32),
            "ln_b": jnp.zeros((1, 2 * D), jnp.float32),
            "w_red": nrm((2 * D, D)),
        },
    }


# --------------------------------- main ----------------------------------------

if __name__ == "__main__":
    cfg = dict(
        nn_size=16,          # t (= 2K)
        num_layers=(2, 2),   # per stage (must be even)
        input_dim=64,        # shot-encoder feature dim
        d_model=32,
        num_heads=(2, 2),    # unused: attention output is discarded in the reference
        batch_size=2,
        window_size=(8, 4),  # t == 2*window for each stage
        hidden_dropout_prob=0.1,
    )
    key = jax.random.PRNGKey(0)
    k_in, k_p = jax.random.split(key)
    x = jax.random.normal(k_in, (cfg["batch_size"], cfg["nn_size"], cfg["input_dim"]),
                          jnp.float32)
    params = init_params(k_p, cfg)

    fwd = jax.jit(lambda xx, pp: swin_transformer_crn_forward(xx, pp, cfg))
    out = jax.block_until_ready(fwd(x, params))

    assert out.shape == (cfg["batch_size"], cfg["nn_size"] // 4, cfg["d_model"])
    assert bool(jnp.all(jnp.isfinite(out)))
    print("KERNEL_OK")
</pallas_src>

<mosaic_0001>
module attributes {stable_mosaic.version = 11 : i64} {
  func.func @kernel(%arg0: memref<32x64xbf16, #tpu.memory_space<vmem>>, %arg1: memref<64x32xbf16, #tpu.memory_space<vmem>>, %arg2: memref<16x32xf32, #tpu.memory_space<vmem>>, %arg3: memref<1x32xf32, #tpu.memory_space<vmem>>, %arg4: memref<1x32xf32, #tpu.memory_space<vmem>>, %arg5: memref<4x1x32xf32, #tpu.memory_space<vmem>>, %arg6: memref<4x1x32xf32, #tpu.memory_space<vmem>>, %arg7: memref<4x1x32xf32, #tpu.memory_space<vmem>>, %arg8: memref<4x1x32xf32, #tpu.memory_space<vmem>>, %arg9: memref<4x32x32xbf16, #tpu.memory_space<vmem>>, %arg10: memref<4x1x32xf32, #tpu.memory_space<vmem>>, %arg11: memref<4x32x32xbf16, #tpu.memory_space<vmem>>, %arg12: memref<4x1x32xf32, #tpu.memory_space<vmem>>, %arg13: memref<1x64xf32, #tpu.memory_space<vmem>>, %arg14: memref<1x64xf32, #tpu.memory_space<vmem>>, %arg15: memref<64x32xbf16, #tpu.memory_space<vmem>>, %arg16: memref<8x32xf32, #tpu.memory_space<vmem>>) attributes {dimension_semantics = [], scalar_prefetch = 0 : i64, scratch_operands = 0 : i64, tpu.core_type = #tpu.core_type<tc>} {
    %c0 = arith.constant 0 : index
    %c0_0 = arith.constant 0 : index
    %0 = vector.load %arg0[%c0, %c0_0] : memref<32x64xbf16, #tpu.memory_space<vmem>>, vector<32x64xbf16>
    %c0_1 = arith.constant 0 : index
    %c0_2 = arith.constant 0 : index
    %1 = vector.load %arg1[%c0_1, %c0_2] : memref<64x32xbf16, #tpu.memory_space<vmem>>, vector<64x32xbf16>
    %cst = arith.constant dense<0.000000e+00> : vector<32x32xf32>
    %2 = tpu.matmul %0, %1, %cst {dimension_numbers = #tpu.dot_dimension_numbers<[1], [0], [0], [1], [0, 0, 1, 1], [], []>} : vector<32x64xbf16>, vector<64x32xbf16>, vector<32x32xf32> -> vector<32x32xf32>
    %3 = vector.shape_cast %2 : vector<32x32xf32> to vector<2x16x32xf32>
    %c0_3 = arith.constant 0 : index
    %c0_4 = arith.constant 0 : index
    %4 = vector.load %arg2[%c0_3, %c0_4] : memref<16x32xf32, #tpu.memory_space<vmem>>, vector<16x32xf32>
    %5 = vector.shape_cast %4 : vector<16x32xf32> to vector<1x16x32xf32>
    %6 = vector.broadcast %5 : vector<1x16x32xf32> to vector<2x16x32xf32>
    %7 = arith.addf %3, %6 : vector<2x16x32xf32>
    %8 = vector.shape_cast %7 : vector<2x16x32xf32> to vector<32x32xf32>
    %c0_5 = arith.constant 0 : index
    %c0_6 = arith.constant 0 : index
    %9 = vector.load %arg3[%c0_5, %c0_6] : memref<1x32xf32, #tpu.memory_space<vmem>>, vector<1x32xf32>
    %c0_7 = arith.constant 0 : index
    %c0_8 = arith.constant 0 : index
    %10 = vector.load %arg4[%c0_7, %c0_8] : memref<1x32xf32, #tpu.memory_space<vmem>>, vector<1x32xf32>
    %cst_9 = arith.constant dense<0.000000e+00> : vector<32xf32>
    %11 = vector.multi_reduction <add>, %8, %cst_9 [1] : vector<32x32xf32> to vector<32xf32>
    %12 = vector.shape_cast %11 : vector<32xf32> to vector<32x1xf32>
    %cst_10 = arith.constant 3.200000e+01 : f32
    %13 = vector.broadcast %cst_10 : f32 to vector<32x1xf32>
    %14 = arith.divf %12, %13 : vector<32x1xf32>
    %15 = arith.mulf %8, %8 : vector<32x32xf32>
    %cst_11 = arith.constant dense<0.000000e+00> : vector<32xf32>
    %16 = vector.multi_reduction <add>, %15, %cst_11 [1] : vector<32x32xf32> to vector<32xf32>
    %17 = vector.shape_cast %16 : vector<32xf32> to vector<32x1xf32>
    %cst_12 = arith.constant 3.200000e+01 : f32
    %18 = vector.broadcast %cst_12 : f32 to vector<32x1xf32>
    %19 = arith.divf %17, %18 : vector<32x1xf32>
    %20 = arith.mulf %14, %14 : vector<32x1xf32>
    %21 = arith.subf %19, %20 : vector<32x1xf32>
    %cst_13 = arith.constant 0.000000e+00 : f32
    %22 = vector.broadcast %cst_13 : f32 to vector<32x1xf32>
    %23 = arith.maximumf %21, %22 : vector<32x1xf32>
    %24 = vector.broadcast %14 : vector<32x1xf32> to vector<32x32xf32>
    %25 = arith.subf %8, %24 : vector<32x32xf32>
    %cst_14 = arith.constant 9.99999996E-13 : f32
    %26 = vector.broadcast %cst_14 : f32 to vector<32x1xf32>
    %27 = arith.addf %23, %26 : vector<32x1xf32>
    %28 = math.rsqrt %27 : vector<32x1xf32>
    %29 = vector.broadcast %28 : vector<32x1xf32> to vector<32x32xf32>
    %30 = arith.mulf %25, %29 : vector<32x32xf32>
    %31 = vector.broadcast %9 : vector<1x32xf32> to vector<32x32xf32>
    %32 = arith.mulf %30, %31 : vector<32x32xf32>
    %33 = vector.broadcast %10 : vector<1x32xf32> to vector<32x32xf32>
    %34 = arith.addf %32, %33 : vector<32x32xf32>
    %c0_15 = arith.constant 0 : index
    %c0_16 = arith.constant 0 : index
    %c0_17 = arith.constant 0 : index
    %35 = vector.load %arg5[%c0_15, %c0_16, %c0_17] : memref<4x1x32xf32, #tpu.memory_space<vmem>>, vector<1x1x32xf32>
    %36 = vector.shape_cast %35 : vector<1x1x32xf32> to vector<1x32xf32>
    %c0_18 = arith.constant 0 : index
    %c0_19 = arith.constant 0 : index
    %c0_20 = arith.constant 0 : index
    %37 = vector.load %arg6[%c0_18, %c0_19, %c0_20] : memref<4x1x32xf32, #tpu.memory_space<vmem>>, vector<1x1x32xf32>
    %38 = vector.shape_cast %37 : vector<1x1x32xf32> to vector<1x32xf32>
    %cst_21 = arith.constant dense<0.000000e+00> : vector<32xf32>
    %39 = vector.multi_reduction <add>, %34, %cst_21 [1] : vector<32x32xf32> to vector<32xf32>
    %40 = vector.shape_cast %39 : vector<32xf32> to vector<32x1xf32>
    %cst_22 = arith.constant 3.200000e+01 : f32
    %41 = vector.broadcast %cst_22 : f32 to vector<32x1xf32>
    %42 = arith.divf %40, %41 : vector<32x1xf32>
    %43 = arith.mulf %34, %34 : vector<32x32xf32>
    %cst_23 = arith.constant dense<0.000000e+00> : vector<32xf32>
    %44 = vector.multi_reduction <add>, %43, %cst_23 [1] : vector<32x32xf32> to vector<32xf32>
    %45 = vector.shape_cast %44 : vector<32xf32> to vector<32x1xf32>
    %cst_24 = arith.constant 3.200000e+01 : f32
    %46 = vector.broadcast %cst_24 : f32 to vector<32x1xf32>
    %47 = arith.divf %45, %46 : vector<32x1xf32>
    %48 = arith.mulf %42, %42 : vector<32x1xf32>
    %49 = arith.subf %47, %48 : vector<32x1xf32>
    %cst_25 = arith.constant 0.000000e+00 : f32
    %50 = vector.broadcast %cst_25 : f32 to vector<32x1xf32>
    %51 = arith.maximumf %49, %50 : vector<32x1xf32>
    %52 = vector.broadcast %42 : vector<32x1xf32> to vector<32x32xf32>
    %53 = arith.subf %34, %52 : vector<32x32xf32>
    %cst_26 = arith.constant 9.99999974E-6 : f32
    %54 = vector.broadcast %cst_26 : f32 to vector<32x1xf32>
    %55 = arith.addf %51, %54 : vector<32x1xf32>
    %56 = math.rsqrt %55 : vector<32x1xf32>
    %57 = vector.broadcast %56 : vector<32x1xf32> to vector<32x32xf32>
    %58 = arith.mulf %53, %57 : vector<32x32xf32>
    %59 = vector.broadcast %36 : vector<1x32xf32> to vector<32x32xf32>
    %60 = arith.mulf %58, %59 : vector<32x32xf32>
    %61 = vector.broadcast %38 : vector<1x32xf32> to vector<32x32xf32>
    %62 = arith.addf %60, %61 : vector<32x32xf32>
    %63 = arith.addf %62, %34 : vector<32x32xf32>
    %c0_27 = arith.constant 0 : index
    %c0_28 = arith.constant 0 : index
    %c0_29 = arith.constant 0 : index
    %64 = vector.load %arg7[%c0_27, %c0_28, %c0_29] : memref<4x1x32xf32, #tpu.memory_space<vmem>>, vector<1x1x32xf32>
    %65 = vector.shape_cast %64 : vector<1x1x32xf32> to vector<1x32xf32>
    %c0_30 = arith.constant 0 : index
    %c0_31 = arith.constant 0 : index
    %c0_32 = arith.constant 0 : index
    %66 = vector.load %arg8[%c0_30, %c0_31, %c0_32] : memref<4x1x32xf32, #tpu.memory_space<vmem>>, vector<1x1x32xf32>
    %67 = vector.shape_cast %66 : vector<1x1x32xf32> to vector<1x32xf32>
    %cst_33 = arith.constant dense<0.000000e+00> : vector<32xf32>
    %68 = vector.multi_reduction <add>, %63, %cst_33 [1] : vector<32x32xf32> to vector<32xf32>
    %69 = vector.shape_cast %68 : vector<32xf32> to vector<32x1xf32>
    %cst_34 = arith.constant 3.200000e+01 : f32
    %70 = vector.broadcast %cst_34 : f32 to vector<32x1xf32>
    %71 = arith.divf %69, %70 : vector<32x1xf32>
    %72 = arith.mulf %63, %63 : vector<32x32xf32>
    %cst_35 = arith.constant dense<0.000000e+00> : vector<32xf32>
    %73 = vector.multi_reduction <add>, %72, %cst_35 [1] : vector<32x32xf32> to vector<32xf32>
    %74 = vector.shape_cast %73 : vector<32xf32> to vector<32x1xf32>
    %cst_36 = arith.constant 3.200000e+01 : f32
    %75 = vector.broadcast %cst_36 : f32 to vector<32x1xf32>
    %76 = arith.divf %74, %75 : vector<32x1xf32>
    %77 = arith.mulf %71, %71 : vector<32x1xf32>
    %78 = arith.subf %76, %77 : vector<32x1xf32>
    %cst_37 = arith.constant 0.000000e+00 : f32
    %79 = vector.broadcast %cst_37 : f32 to vector<32x1xf32>
    %80 = arith.maximumf %78, %79 : vector<32x1xf32>
    %81 = vector.broadcast %71 : vector<32x1xf32> to vector<32x32xf32>
    %82 = arith.subf %63, %81 : vector<32x32xf32>
    %cst_38 = arith.constant 9.99999974E-6 : f32
    %83 = vector.broadcast %cst_38 : f32 to vector<32x1xf32>
    %84 = arith.addf %80, %83 : vector<32x1xf32>
    %85 = math.rsqrt %84 : vector<32x1xf32>
    %86 = vector.broadcast %85 : vector<32x1xf32> to vector<32x32xf32>
    %87 = arith.mulf %82, %86 : vector<32x32xf32>
    %88 = vector.broadcast %65 : vector<1x32xf32> to vector<32x32xf32>
    %89 = arith.mulf %87, %88 : vector<32x32xf32>
    %90 = vector.broadcast %67 : vector<1x32xf32> to vector<32x32xf32>
    %91 = arith.addf %89, %90 : vector<32x32xf32>
    %92 = arith.truncf %91 : vector<32x32xf32> to vector<32x32xbf16>
    %c0_39 = arith.constant 0 : index
    %c0_40 = arith.constant 0 : index
    %c0_41 = arith.constant 0 : index
    %93 = vector.load %arg9[%c0_39, %c0_40, %c0_41] : memref<4x32x32xbf16, #tpu.memory_space<vmem>>, vector<1x32x32xbf16>
    %94 = vector.shape_cast %93 : vector<1x32x32xbf16> to vector<32x32xbf16>
    %cst_42 = arith.constant dense<0.000000e+00> : vector<32x32xf32>
    %95 = tpu.matmul %92, %94, %cst_42 {dimension_numbers = #tpu.dot_dimension_numbers<[1], [0], [0], [1], [0, 0, 1, 1], [], []>} : vector<32x32xbf16>, vector<32x32xbf16>, vector<32x32xf32> -> vector<32x32xf32>
    %c0_43 = arith.constant 0 : index
    %c0_44 = arith.constant 0 : index
    %c0_45 = arith.constant 0 : index
    %96 = vector.load %arg10[%c0_43, %c0_44, %c0_45] : memref<4x1x32xf32, #tpu.memory_space<vmem>>, vector<1x1x32xf32>
    %97 = vector.shape_cast %96 : vector<1x1x32xf32> to vector<1x32xf32>
    %98 = vector.broadcast %97 : vector<1x32xf32> to vector<32x32xf32>
    %99 = arith.addf %95, %98 : vector<32x32xf32>
    %cst_46 = arith.constant 5.000000e-01 : f32
    %100 = vector.broadcast %cst_46 : f32 to vector<32x32xf32>
    %101 = arith.mulf %100, %99 : vector<32x32xf32>
    %cst_47 = arith.constant 0.707106769 : f32
    %102 = vector.broadcast %cst_47 : f32 to vector<32x32xf32>
    %103 = arith.mulf %99, %102 : vector<32x32xf32>
    %cst_48 = arith.constant 0.000000e+00 : f32
    %104 = vector.broadcast %cst_48 : f32 to vector<32x32xf32>
    %105 = arith.cmpf oge, %103, %104 : vector<32x32xf32>
    %cst_49 = arith.constant 1.000000e+00 : f32
    %cst_50 = arith.constant -1.000000e+00 : f32
    %106 = vector.broadcast %cst_49 : f32 to vector<32x32xf32>
    %107 = vector.broadcast %cst_50 : f32 to vector<32x32xf32>
    %108 = arith.select %105, %106, %107 : vector<32x32xi1>, vector<32x32xf32>
    %109 = math.absf %103 : vector<32x32xf32>
    %cst_51 = arith.constant 0.327591091 : f32
    %110 = vector.broadcast %cst_51 : f32 to vector<32x32xf32>
    %111 = arith.mulf %110, %109 : vector<32x32xf32>
    %cst_52 = arith.constant 1.000000e+00 : f32
    %112 = vector.broadcast %cst_52 : f32 to vector<32x32xf32>
    %113 = arith.addf %112, %111 : vector<32x32xf32>
    %114 = tpu.reciprocal %113 {approx = true} : vector<32x32xf32> -> vector<32x32xf32>
    %115 = arith.mulf %113, %114 : vector<32x32xf32>
    %cst_53 = arith.constant 2.000000e+00 : f32
    %116 = vector.broadcast %cst_53 : f32 to vector<32x32xf32>
    %117 = arith.subf %116, %115 : vector<32x32xf32>
    %118 = arith.mulf %114, %117 : vector<32x32xf32>
    %cst_54 = arith.constant 1.06140542 : f32
    %119 = vector.broadcast %cst_54 : f32 to vector<32x32xf32>
    %120 = arith.mulf %119, %118 : vector<32x32xf32>
    %cst_55 = arith.constant -1.45315206 : f32
    %121 = vector.broadcast %cst_55 : f32 to vector<32x32xf32>
    %122 = arith.addf %120, %121 : vector<32x32xf32>
    %123 = arith.mulf %122, %118 : vector<32x32xf32>
    %cst_56 = arith.constant 1.42141378 : f32
    %124 = vector.broadcast %cst_56 : f32 to vector<32x32xf32>
    %125 = arith.addf %123, %124 : vector<32x32xf32>
    %126 = arith.mulf %125, %118 : vector<32x32xf32>
    %cst_57 = arith.constant -0.284496725 : f32
    %127 = vector.broadcast %cst_57 : f32 to vector<32x32xf32>
    %128 = arith.addf %126, %127 : vector<32x32xf32>
    %129 = arith.mulf %128, %118 : vector<32x32xf32>
    %cst_58 = arith.constant 0.254829586 : f32
    %130 = vector.broadcast %cst_58 : f32 to vector<32x32xf32>
    %131 = arith.addf %129, %130 : vector<32x32xf32>
    %132 = arith.mulf %131, %118 : vector<32x32xf32>
    %cst_59 = arith.constant 0.000000e+00 : f32
    %133 = vector.broadcast %cst_59 : f32 to vector<32x32xf32>
    %134 = arith.subf %133, %109 : vector<32x32xf32>
    %135 = arith.mulf %134, %109 : vector<32x32xf32>
    %136 = math.exp %135 : vector<32x32xf32>
    %137 = arith.mulf %132, %136 : vector<32x32xf32>
    %cst_60 = arith.constant 1.000000e+00 : f32
    %138 = vector.broadcast %cst_60 : f32 to vector<32x32xf32>
    %139 = arith.subf %138, %137 : vector<32x32xf32>
    %140 = arith.mulf %108, %139 : vector<32x32xf32>
    %cst_61 = arith.constant 1.000000e+00 : f32
    %141 = vector.broadcast %cst_61 : f32 to vector<32x32xf32>
    %142 = arith.addf %141, %140 : vector<32x32xf32>
    %143 = arith.mulf %101, %142 : vector<32x32xf32>
    %144 = arith.truncf %143 : vector<32x32xf32> to vector<32x32xbf16>
    %c0_62 = arith.constant 0 : index
    %c0_63 = arith.constant 0 : index
    %c0_64 = arith.constant 0 : index
    %145 = vector.load %arg11[%c0_62, %c0_63, %c0_64] : memref<4x32x32xbf16, #tpu.memory_space<vmem>>, vector<1x32x32xbf16>
    %146 = vector.shape_cast %145 : vector<1x32x32xbf16> to vector<32x32xbf16>
    %cst_65 = arith.constant dense<0.000000e+00> : vector<32x32xf32>
    %147 = tpu.matmul %144, %146, %cst_65 {dimension_numbers = #tpu.dot_dimension_numbers<[1], [0], [0], [1], [0, 0, 1, 1], [], []>} : vector<32x32xbf16>, vector<32x32xbf16>, vector<32x32xf32> -> vector<32x32xf32>
    %c0_66 = arith.constant 0 : index
    %c0_67 = arith.constant 0 : index
    %c0_68 = arith.constant 0 : index
    %148 = vector.load %arg12[%c0_66, %c0_67, %c0_68] : memref<4x1x32xf32, #tpu.memory_space<vmem>>, vector<1x1x32xf32>
    %149 = vector.shape_cast %148 : vector<1x1x32xf32> to vector<1x32xf32>
    %150 = vector.broadcast %149 : vector<1x32xf32> to vector<32x32xf32>
    %151 = arith.addf %147, %150 : vector<32x32xf32>
    %152 = arith.addf %151, %63 : vector<32x32xf32>
    %c1 = arith.constant 1 : index
    %c0_69 = arith.constant 0 : index
    %c0_70 = arith.constant 0 : index
    %153 = vector.load %arg5[%c1, %c0_69, %c0_70] : memref<4x1x32xf32, #tpu.memory_space<vmem>>, vector<1x1x32xf32>
    %154 = vector.shape_cast %153 : vector<1x1x32xf32> to vector<1x32xf32>
    %c1_71 = arith.constant 1 : index
    %c0_72 = arith.constant 0 : index
    %c0_73 = arith.constant 0 : index
    %155 = vector.load %arg6[%c1_71, %c0_72, %c0_73] : memref<4x1x32xf32, #tpu.memory_space<vmem>>, vector<1x1x32xf32>
    %156 = vector.shape_cast %155 : vector<1x1x32xf32> to vector<1x32xf32>
    %cst_74 = arith.constant dense<0.000000e+00> : vector<32xf32>
    %157 = vector.multi_reduction <add>, %152, %cst_74 [1] : vector<32x32xf32> to vector<32xf32>
    %158 = vector.shape_cast %157 : vector<32xf32> to vector<32x1xf32>
    %cst_75 = arith.constant 3.200000e+01 : f32
    %159 = vector.broadcast %cst_75 : f32 to vector<32x1xf32>
    %160 = arith.divf %158, %159 : vector<32x1xf32>
    %161 = arith.mulf %152, %152 : vector<32x32xf32>
    %cst_76 = arith.constant dense<0.000000e+00> : vector<32xf32>
    %162 = vector.multi_reduction <add>, %161, %cst_76 [1] : vector<32x32xf32> to vector<32xf32>
    %163 = vector.shape_cast %162 : vector<32xf32> to vector<32x1xf32>
    %cst_77 = arith.constant 3.200000e+01 : f32
    %164 = vector.broadcast %cst_77 : f32 to vector<32x1xf32>
    %165 = arith.divf %163, %164 : vector<32x1xf32>
    %166 = arith.mulf %160, %160 : vector<32x1xf32>
    %167 = arith.subf %165, %166 : vector<32x1xf32>
    %cst_78 = arith.constant 0.000000e+00 : f32
    %168 = vector.broadcast %cst_78 : f32 to vector<32x1xf32>
    %169 = arith.maximumf %167, %168 : vector<32x1xf32>
    %170 = vector.broadcast %160 : vector<32x1xf32> to vector<32x32xf32>
    %171 = arith.subf %152, %170 : vector<32x32xf32>
    %cst_79 = arith.constant 9.99999974E-6 : f32
    %172 = vector.broadcast %cst_79 : f32 to vector<32x1xf32>
    %173 = arith.addf %169, %172 : vector<32x1xf32>
    %174 = math.rsqrt %173 : vector<32x1xf32>
    %175 = vector.broadcast %174 : vector<32x1xf32> to vector<32x32xf32>
    %176 = arith.mulf %171, %175 : vector<32x32xf32>
    %177 = vector.broadcast %154 : vector<1x32xf32> to vector<32x32xf32>
    %178 = arith.mulf %176, %177 : vector<32x32xf32>
    %179 = vector.broadcast %156 : vector<1x32xf32> to vector<32x32xf32>
    %180 = arith.addf %178, %179 : vector<32x32xf32>
    %181 = arith.addf %180, %152 : vector<32x32xf32>
    %c1_80 = arith.constant 1 : index
    %c0_81 = arith.constant 0 : index
    %c0_82 = arith.constant 0 : index
    %182 = vector.load %arg7[%c1_80, %c0_81, %c0_82] : memref<4x1x32xf32, #tpu.memory_space<vmem>>, vector<1x1x32xf32>
    %183 = vector.shape_cast %182 : vector<1x1x32xf32> to vector<1x32xf32>
    %c1_83 = arith.constant 1 : index
    %c0_84 = arith.constant 0 : index
    %c0_85 = arith.constant 0 : index
    %184 = vector.load %arg8[%c1_83, %c0_84, %c0_85] : memref<4x1x32xf32, #tpu.memory_space<vmem>>, vector<1x1x32xf32>
    %185 = vector.shape_cast %184 : vector<1x1x32xf32> to vector<1x32xf32>
    %cst_86 = arith.constant dense<0.000000e+00> : vector<32xf32>
    %186 = vector.multi_reduction <add>, %181, %cst_86 [1] : vector<32x32xf32> to vector<32xf32>
    %187 = vector.shape_cast %186 : vector<32xf32> to vector<32x1xf32>
    %cst_87 = arith.constant 3.200000e+01 : f32
    %188 = vector.broadcast %cst_87 : f32 to vector<32x1xf32>
    %189 = arith.divf %187, %188 : vector<32x1xf32>
    %190 = arith.mulf %181, %181 : vector<32x32xf32>
    %cst_88 = arith.constant dense<0.000000e+00> : vector<32xf32>
    %191 = vector.multi_reduction <add>, %190, %cst_88 [1] : vector<32x32xf32> to vector<32xf32>
    %192 = vector.shape_cast %191 : vector<32xf32> to vector<32x1xf32>
    %cst_89 = arith.constant 3.200000e+01 : f32
    %193 = vector.broadcast %cst_89 : f32 to vector<32x1xf32>
    %194 = arith.divf %192, %193 : vector<32x1xf32>
    %195 = arith.mulf %189, %189 : vector<32x1xf32>
    %196 = arith.subf %194, %195 : vector<32x1xf32>
    %cst_90 = arith.constant 0.000000e+00 : f32
    %197 = vector.broadcast %cst_90 : f32 to vector<32x1xf32>
    %198 = arith.maximumf %196, %197 : vector<32x1xf32>
    %199 = vector.broadcast %189 : vector<32x1xf32> to vector<32x32xf32>
    %200 = arith.subf %181, %199 : vector<32x32xf32>
    %cst_91 = arith.constant 9.99999974E-6 : f32
    %201 = vector.broadcast %cst_91 : f32 to vector<32x1xf32>
    %202 = arith.addf %198, %201 : vector<32x1xf32>
    %203 = math.rsqrt %202 : vector<32x1xf32>
    %204 = vector.broadcast %203 : vector<32x1xf32> to vector<32x32xf32>
    %205 = arith.mulf %200, %204 : vector<32x32xf32>
    %206 = vector.broadcast %183 : vector<1x32xf32> to vector<32x32xf32>
    %207 = arith.mulf %205, %206 : vector<32x32xf32>
    %208 = vector.broadcast %185 : vector<1x32xf32> to vector<32x32xf32>
    %209 = arith.addf %207, %208 : vector<32x32xf32>
    %210 = arith.truncf %209 : vector<32x32xf32> to vector<32x32xbf16>
    %c1_92 = arith.constant 1 : index
    %c0_93 = arith.constant 0 : index
    %c0_94 = arith.constant 0 : index
    %211 = vector.load %arg9[%c1_92, %c0_93, %c0_94] : memref<4x32x32xbf16, #tpu.memory_space<vmem>>, vector<1x32x32xbf16>
    %212 = vector.shape_cast %211 : vector<1x32x32xbf16> to vector<32x32xbf16>
    %cst_95 = arith.constant dense<0.000000e+00> : vector<32x32xf32>
    %213 = tpu.matmul %210, %212, %cst_95 {dimension_numbers = #tpu.dot_dimension_numbers<[1], [0], [0], [1], [0, 0, 1, 1], [], []>} : vector<32x32xbf16>, vector<32x32xbf16>, vector<32x32xf32> -> vector<32x32xf32>
    %c1_96 = arith.constant 1 : index
    %c0_97 = arith.constant 0 : index
    %c0_98 = arith.constant 0 : index
    %214 = vector.load %arg10[%c1_96, %c0_97, %c0_98] : memref<4x1x32xf32, #tpu.memory_space<vmem>>, vector<1x1x32xf32>
    %215 = vector.shape_cast %214 : vector<1x1x32xf32> to vector<1x32xf32>
    %216 = vector.broadcast %215 : vector<1x32xf32> to vector<32x32xf32>
    %217 = arith.addf %213, %216 : vector<32x32xf32>
    %cst_99 = arith.constant 5.000000e-01 : f32
    %218 = vector.broadcast %cst_99 : f32 to vector<32x32xf32>
    %219 = arith.mulf %218, %217 : vector<32x32xf32>
    %cst_100 = arith.constant 0.707106769 : f32
    %220 = vector.broadcast %cst_100 : f32 to vector<32x32xf32>
    %221 = arith.mulf %217, %220 : vector<32x32xf32>
    %cst_101 = arith.constant 0.000000e+00 : f32
    %222 = vector.broadcast %cst_101 : f32 to vector<32x32xf32>
    %223 = arith.cmpf oge, %221, %222 : vector<32x32xf32>
    %cst_102 = arith.constant 1.000000e+00 : f32
    %cst_103 = arith.constant -1.000000e+00 : f32
    %224 = vector.broadcast %cst_102 : f32 to vector<32x32xf32>
    %225 = vector.broadcast %cst_103 : f32 to vector<32x32xf32>
    %226 = arith.select %223, %224, %225 : vector<32x32xi1>, vector<32x32xf32>
    %227 = math.absf %221 : vector<32x32xf32>
    %cst_104 = arith.constant 0.327591091 : f32
    %228 = vector.broadcast %cst_104 : f32 to vector<32x32xf32>
    %229 = arith.mulf %228, %227 : vector<32x32xf32>
    %cst_105 = arith.constant 1.000000e+00 : f32
    %230 = vector.broadcast %cst_105 : f32 to vector<32x32xf32>
    %231 = arith.addf %230, %229 : vector<32x32xf32>
    %232 = tpu.reciprocal %231 {approx = true} : vector<32x32xf32> -> vector<32x32xf32>
    %233 = arith.mulf %231, %232 : vector<32x32xf32>
    %cst_106 = arith.constant 2.000000e+00 : f32
    %234 = vector.broadcast %cst_106 : f32 to vector<32x32xf32>
    %235 = arith.subf %234, %233 : vector<32x32xf32>
    %236 = arith.mulf %232, %235 : vector<32x32xf32>
    %cst_107 = arith.constant 1.06140542 : f32
    %237 = vector.broadcast %cst_107 : f32 to vector<32x32xf32>
    %238 = arith.mulf %237, %236 : vector<32x32xf32>
    %cst_108 = arith.constant -1.45315206 : f32
    %239 = vector.broadcast %cst_108 : f32 to vector<32x32xf32>
    %240 = arith.addf %238, %239 : vector<32x32xf32>
    %241 = arith.mulf %240, %236 : vector<32x32xf32>
    %cst_109 = arith.constant 1.42141378 : f32
    %242 = vector.broadcast %cst_109 : f32 to vector<32x32xf32>
    %243 = arith.addf %241, %242 : vector<32x32xf32>
    %244 = arith.mulf %243, %236 : vector<32x32xf32>
    %cst_110 = arith.constant -0.284496725 : f32
    %245 = vector.broadcast %cst_110 : f32 to vector<32x32xf32>
    %246 = arith.addf %244, %245 : vector<32x32xf32>
    %247 = arith.mulf %246, %236 : vector<32x32xf32>
    %cst_111 = arith.constant 0.254829586 : f32
    %248 = vector.broadcast %cst_111 : f32 to vector<32x32xf32>
    %249 = arith.addf %247, %248 : vector<32x32xf32>
    %250 = arith.mulf %249, %236 : vector<32x32xf32>
    %cst_112 = arith.constant 0.000000e+00 : f32
    %251 = vector.broadcast %cst_112 : f32 to vector<32x32xf32>
    %252 = arith.subf %251, %227 : vector<32x32xf32>
    %253 = arith.mulf %252, %227 : vector<32x32xf32>
    %254 = math.exp %253 : vector<32x32xf32>
    %255 = arith.mulf %250, %254 : vector<32x32xf32>
    %cst_113 = arith.constant 1.000000e+00 : f32
    %256 = vector.broadcast %cst_113 : f32 to vector<32x32xf32>
    %257 = arith.subf %256, %255 : vector<32x32xf32>
    %258 = arith.mulf %226, %257 : vector<32x32xf32>
    %cst_114 = arith.constant 1.000000e+00 : f32
    %259 = vector.broadcast %cst_114 : f32 to vector<32x32xf32>
    %260 = arith.addf %259, %258 : vector<32x32xf32>
    %261 = arith.mulf %219, %260 : vector<32x32xf32>
    %262 = arith.truncf %261 : vector<32x32xf32> to vector<32x32xbf16>
    %c1_115 = arith.constant 1 : index
    %c0_116 = arith.constant 0 : index
    %c0_117 = arith.constant 0 : index
    %263 = vector.load %arg11[%c1_115, %c0_116, %c0_117] : memref<4x32x32xbf16, #tpu.memory_space<vmem>>, vector<1x32x32xbf16>
    %264 = vector.shape_cast %263 : vector<1x32x32xbf16> to vector<32x32xbf16>
    %cst_118 = arith.constant dense<0.000000e+00> : vector<32x32xf32>
    %265 = tpu.matmul %262, %264, %cst_118 {dimension_numbers = #tpu.dot_dimension_numbers<[1], [0], [0], [1], [0, 0, 1, 1], [], []>} : vector<32x32xbf16>, vector<32x32xbf16>, vector<32x32xf32> -> vector<32x32xf32>
    %c1_119 = arith.constant 1 : index
    %c0_120 = arith.constant 0 : index
    %c0_121 = arith.constant 0 : index
    %266 = vector.load %arg12[%c1_119, %c0_120, %c0_121] : memref<4x1x32xf32, #tpu.memory_space<vmem>>, vector<1x1x32xf32>
    %267 = vector.shape_cast %266 : vector<1x1x32xf32> to vector<1x32xf32>
    %268 = vector.broadcast %267 : vector<1x32xf32> to vector<32x32xf32>
    %269 = arith.addf %265, %268 : vector<32x32xf32>
    %270 = arith.addf %269, %181 : vector<32x32xf32>
    %271 = vector.extract_strided_slice %270 {offsets = [0, 0], sizes = [8, 32], strides = [1, 1]} : vector<32x32xf32> to vector<8x32xf32>
    %272 = vector.extract_strided_slice %270 {offsets = [8, 0], sizes = [8, 32], strides = [1, 1]} : vector<32x32xf32> to vector<8x32xf32>
    %273 = tpu.concatenate %271, %272 in 1 : vector<8x32xf32>, vector<8x32xf32> -> vector<8x64xf32>
    %274 = vector.extract_strided_slice %270 {offsets = [16, 0], sizes = [8, 32], strides = [1, 1]} : vector<32x32xf32> to vector<8x32xf32>
    %275 = vector.extract_strided_slice %270 {offsets = [24, 0], sizes = [8, 32], strides = [1, 1]} : vector<32x32xf32> to vector<8x32xf32>
    %276 = tpu.concatenate %274, %275 in 1 : vector<8x32xf32>, vector<8x32xf32> -> vector<8x64xf32>
    %277 = tpu.concatenate %273, %276 in 0 : vector<8x64xf32>, vector<8x64xf32> -> vector<16x64xf32>
    %c0_122 = arith.constant 0 : index
    %c0_123 = arith.constant 0 : index
    %278 = vector.load %arg13[%c0_122, %c0_123] : memref<1x64xf32, #tpu.memory_space<vmem>>, vector<1x64xf32>
    %c0_124 = arith.constant 0 : index
    %c0_125 = arith.constant 0 : index
    %279 = vector.load %arg14[%c0_124, %c0_125] : memref<1x64xf32, #tpu.memory_space<vmem>>, vector<1x64xf32>
    %cst_126 = arith.constant dense<0.000000e+00> : vector<16xf32>
    %280 = vector.multi_reduction <add>, %277, %cst_126 [1] : vector<16x64xf32> to vector<16xf32>
    %281 = vector.shape_cast %280 : vector<16xf32> to vector<16x1xf32>
    %cst_127 = arith.constant 6.400000e+01 : f32
    %282 = vector.broadcast %cst_127 : f32 to vector<16x1xf32>
    %283 = arith.divf %281, %282 : vector<16x1xf32>
    %284 = arith.mulf %277, %277 : vector<16x64xf32>
    %cst_128 = arith.constant dense<0.000000e+00> : vector<16xf32>
    %285 = vector.multi_reduction <add>, %284, %cst_128 [1] : vector<16x64xf32> to vector<16xf32>
    %286 = vector.shape_cast %285 : vector<16xf32> to vector<16x1xf32>
    %cst_129 = arith.constant 6.400000e+01 : f32
    %287 = vector.broadcast %cst_129 : f32 to vector<16x1xf32>
    %288 = arith.divf %286, %287 : vector<16x1xf32>
    %289 = arith.mulf %283, %283 : vector<16x1xf32>
    %290 = arith.subf %288, %289 : vector<16x1xf32>
    %cst_130 = arith.constant 0.000000e+00 : f32
    %291 = vector.broadcast %cst_130 : f32 to vector<16x1xf32>
    %292 = arith.maximumf %290, %291 : vector<16x1xf32>
    %293 = vector.broadcast %283 : vector<16x1xf32> to vector<16x64xf32>
    %294 = arith.subf %277, %293 : vector<16x64xf32>
    %cst_131 = arith.constant 9.99999974E-6 : f32
    %295 = vector.broadcast %cst_131 : f32 to vector<16x1xf32>
    %296 = arith.addf %292, %295 : vector<16x1xf32>
    %297 = math.rsqrt %296 : vector<16x1xf32>
    %298 = vector.broadcast %297 : vector<16x1xf32> to vector<16x64xf32>
    %299 = arith.mulf %294, %298 : vector<16x64xf32>
    %300 = vector.broadcast %278 : vector<1x64xf32> to vector<16x64xf32>
    %301 = arith.mulf %299, %300 : vector<16x64xf32>
    %302 = vector.broadcast %279 : vector<1x64xf32> to vector<16x64xf32>
    %303 = arith.addf %301, %302 : vector<16x64xf32>
    %304 = arith.truncf %303 : vector<16x64xf32> to vector<16x64xbf16>
    %c0_132 = arith.constant 0 : index
    %c0_133 = arith.constant 0 : index
    %305 = vector.load %arg15[%c0_132, %c0_133] : memref<64x32xbf16, #tpu.memory_space<vmem>>, vector<64x32xbf16>
    %cst_134 = arith.constant dense<0.000000e+00> : vector<16x32xf32>
    %306 = tpu.matmul %304, %305, %cst_134 {dimension_numbers = #tpu.dot_dimension_numbers<[1], [0], [0], [1], [0, 0, 1, 1], [], []>} : vector<16x64xbf16>, vector<64x32xbf16>, vector<16x32xf32> -> vector<16x32xf32>
    %c2 = arith.constant 2 : index
    %c0_135 = arith.constant 0 : index
    %c0_136 = arith.constant 0 : index
    %307 = vector.load %arg5[%c2, %c0_135, %c0_136] : memref<4x1x32xf32, #tpu.memory_space<vmem>>, vector<1x1x32xf32>
    %308 = vector.shape_cast %307 : vector<1x1x32xf32> to vector<1x32xf32>
    %c2_137 = arith.constant 2 : index
    %c0_138 = arith.constant 0 : index
    %c0_139 = arith.constant 0 : index
    %309 = vector.load %arg6[%c2_137, %c0_138, %c0_139] : memref<4x1x32xf32, #tpu.memory_space<vmem>>, vector<1x1x32xf32>
    %310 = vector.shape_cast %309 : vector<1x1x32xf32> to vector<1x32xf32>
    %cst_140 = arith.constant dense<0.000000e+00> : vector<16xf32>
    %311 = vector.multi_reduction <add>, %306, %cst_140 [1] : vector<16x32xf32> to vector<16xf32>
    %312 = vector.shape_cast %311 : vector<16xf32> to vector<16x1xf32>
    %cst_141 = arith.constant 3.200000e+01 : f32
    %313 = vector.broadcast %cst_141 : f32 to vector<16x1xf32>
    %314 = arith.divf %312, %313 : vector<16x1xf32>
    %315 = arith.mulf %306, %306 : vector<16x32xf32>
    %cst_142 = arith.constant dense<0.000000e+00> : vector<16xf32>
    %316 = vector.multi_reduction <add>, %315, %cst_142 [1] : vector<16x32xf32> to vector<16xf32>
    %317 = vector.shape_cast %316 : vector<16xf32> to vector<16x1xf32>
    %cst_143 = arith.constant 3.200000e+01 : f32
    %318 = vector.broadcast %cst_143 : f32 to vector<16x1xf32>
    %319 = arith.divf %317, %318 : vector<16x1xf32>
    %320 = arith.mulf %314, %314 : vector<16x1xf32>
    %321 = arith.subf %319, %320 : vector<16x1xf32>
    %cst_144 = arith.constant 0.000000e+00 : f32
    %322 = vector.broadcast %cst_144 : f32 to vector<16x1xf32>
    %323 = arith.maximumf %321, %322 : vector<16x1xf32>
    %324 = vector.broadcast %314 : vector<16x1xf32> to vector<16x32xf32>
    %325 = arith.subf %306, %324 : vector<16x32xf32>
    %cst_145 = arith.constant 9.99999974E-6 : f32
    %326 = vector.broadcast %cst_145 : f32 to vector<16x1xf32>
    %327 = arith.addf %323, %326 : vector<16x1xf32>
    %328 = math.rsqrt %327 : vector<16x1xf32>
    %329 = vector.broadcast %328 : vector<16x1xf32> to vector<16x32xf32>
    %330 = arith.mulf %325, %329 : vector<16x32xf32>
    %331 = vector.broadcast %308 : vector<1x32xf32> to vector<16x32xf32>
    %332 = arith.mulf %330, %331 : vector<16x32xf32>
    %333 = vector.broadcast %310 : vector<1x32xf32> to vector<16x32xf32>
    %334 = arith.addf %332, %333 : vector<16x32xf32>
    %335 = arith.addf %334, %306 : vector<16x32xf32>
    %c2_146 = arith.constant 2 : index
    %c0_147 = arith.constant 0 : index
    %c0_148 = arith.constant 0 : index
    %336 = vector.load %arg7[%c2_146, %c0_147, %c0_148] : memref<4x1x32xf32, #tpu.memory_space<vmem>>, vector<1x1x32xf32>
    %337 = vector.shape_cast %336 : vector<1x1x32xf32> to vector<1x32xf32>
    %c2_149 = arith.constant 2 : index
    %c0_150 = arith.constant 0 : index
    %c0_151 = arith.constant 0 : index
    %338 = vector.load %arg8[%c2_149, %c0_150, %c0_151] : memref<4x1x32xf32, #tpu.memory_space<vmem>>, vector<1x1x32xf32>
    %339 = vector.shape_cast %338 : vector<1x1x32xf32> to vector<1x32xf32>
    %cst_152 = arith.constant dense<0.000000e+00> : vector<16xf32>
    %340 = vector.multi_reduction <add>, %335, %cst_152 [1] : vector<16x32xf32> to vector<16xf32>
    %341 = vector.shape_cast %340 : vector<16xf32> to vector<16x1xf32>
    %cst_153 = arith.constant 3.200000e+01 : f32
    %342 = vector.broadcast %cst_153 : f32 to vector<16x1xf32>
    %343 = arith.divf %341, %342 : vector<16x1xf32>
    %344 = arith.mulf %335, %335 : vector<16x32xf32>
    %cst_154 = arith.constant dense<0.000000e+00> : vector<16xf32>
    %345 = vector.multi_reduction <add>, %344, %cst_154 [1] : vector<16x32xf32> to vector<16xf32>
    %346 = vector.shape_cast %345 : vector<16xf32> to vector<16x1xf32>
    %cst_155 = arith.constant 3.200000e+01 : f32
    %347 = vector.broadcast %cst_155 : f32 to vector<16x1xf32>
    %348 = arith.divf %346, %347 : vector<16x1xf32>
    %349 = arith.mulf %343, %343 : vector<16x1xf32>
    %350 = arith.subf %348, %349 : vector<16x1xf32>
    %cst_156 = arith.constant 0.000000e+00 : f32
    %351 = vector.broadcast %cst_156 : f32 to vector<16x1xf32>
    %352 = arith.maximumf %350, %351 : vector<16x1xf32>
    %353 = vector.broadcast %343 : vector<16x1xf32> to vector<16x32xf32>
    %354 = arith.subf %335, %353 : vector<16x32xf32>
    %cst_157 = arith.constant 9.99999974E-6 : f32
    %355 = vector.broadcast %cst_157 : f32 to vector<16x1xf32>
    %356 = arith.addf %352, %355 : vector<16x1xf32>
    %357 = math.rsqrt %356 : vector<16x1xf32>
    %358 = vector.broadcast %357 : vector<16x1xf32> to vector<16x32xf32>
    %359 = arith.mulf %354, %358 : vector<16x32xf32>
    %360 = vector.broadcast %337 : vector<1x32xf32> to vector<16x32xf32>
    %361 = arith.mulf %359, %360 : vector<16x32xf32>
    %362 = vector.broadcast %339 : vector<1x32xf32> to vector<16x32xf32>
    %363 = arith.addf %361, %362 : vector<16x32xf32>
    %364 = arith.truncf %363 : vector<16x32xf32> to vector<16x32xbf16>
    %c2_158 = arith.constant 2 : index
    %c0_159 = arith.constant 0 : index
    %c0_160 = arith.constant 0 : index
    %365 = vector.load %arg9[%c2_158, %c0_159, %c0_160] : memref<4x32x32xbf16, #tpu.memory_space<vmem>>, vector<1x32x32xbf16>
    %366 = vector.shape_cast %365 : vector<1x32x32xbf16> to vector<32x32xbf16>
    %cst_161 = arith.constant dense<0.000000e+00> : vector<16x32xf32>
    %367 = tpu.matmul %364, %366, %cst_161 {dimension_numbers = #tpu.dot_dimension_numbers<[1], [0], [0], [1], [0, 0, 1, 1], [], []>} : vector<16x32xbf16>, vector<32x32xbf16>, vector<16x32xf32> -> vector<16x32xf32>
    %c2_162 = arith.constant 2 : index
    %c0_163 = arith.constant 0 : index
    %c0_164 = arith.constant 0 : index
    %368 = vector.load %arg10[%c2_162, %c0_163, %c0_164] : memref<4x1x32xf32, #tpu.memory_space<vmem>>, vector<1x1x32xf32>
    %369 = vector.shape_cast %368 : vector<1x1x32xf32> to vector<1x32xf32>
    %370 = vector.broadcast %369 : vector<1x32xf32> to vector<16x32xf32>
    %371 = arith.addf %367, %370 : vector<16x32xf32>
    %cst_165 = arith.constant 5.000000e-01 : f32
    %372 = vector.broadcast %cst_165 : f32 to vector<16x32xf32>
    %373 = arith.mulf %372, %371 : vector<16x32xf32>
    %cst_166 = arith.constant 0.707106769 : f32
    %374 = vector.broadcast %cst_166 : f32 to vector<16x32xf32>
    %375 = arith.mulf %371, %374 : vector<16x32xf32>
    %cst_167 = arith.constant 0.000000e+00 : f32
    %376 = vector.broadcast %cst_167 : f32 to vector<16x32xf32>
    %377 = arith.cmpf oge, %375, %376 : vector<16x32xf32>
    %cst_168 = arith.constant 1.000000e+00 : f32
    %cst_169 = arith.constant -1.000000e+00 : f32
    %378 = vector.broadcast %cst_168 : f32 to vector<16x32xf32>
    %379 = vector.broadcast %cst_169 : f32 to vector<16x32xf32>
    %380 = arith.select %377, %378, %379 : vector<16x32xi1>, vector<16x32xf32>
    %381 = math.absf %375 : vector<16x32xf32>
    %cst_170 = arith.constant 0.327591091 : f32
    %382 = vector.broadcast %cst_170 : f32 to vector<16x32xf32>
    %383 = arith.mulf %382, %381 : vector<16x32xf32>
    %cst_171 = arith.constant 1.000000e+00 : f32
    %384 = vector.broadcast %cst_171 : f32 to vector<16x32xf32>
    %385 = arith.addf %384, %383 : vector<16x32xf32>
    %386 = tpu.reciprocal %385 {approx = true} : vector<16x32xf32> -> vector<16x32xf32>
    %387 = arith.mulf %385, %386 : vector<16x32xf32>
    %cst_172 = arith.constant 2.000000e+00 : f32
    %388 = vector.broadcast %cst_172 : f32 to vector<16x32xf32>
    %389 = arith.subf %388, %387 : vector<16x32xf32>
    %390 = arith.mulf %386, %389 : vector<16x32xf32>
    %cst_173 = arith.constant 1.06140542 : f32
    %391 = vector.broadcast %cst_173 : f32 to vector<16x32xf32>
    %392 = arith.mulf %391, %390 : vector<16x32xf32>
    %cst_174 = arith.constant -1.45315206 : f32
    %393 = vector.broadcast %cst_174 : f32 to vector<16x32xf32>
    %394 = arith.addf %392, %393 : vector<16x32xf32>
    %395 = arith.mulf %394, %390 : vector<16x32xf32>
    %cst_175 = arith.constant 1.42141378 : f32
    %396 = vector.broadcast %cst_175 : f32 to vector<16x32xf32>
    %397 = arith.addf %395, %396 : vector<16x32xf32>
    %398 = arith.mulf %397, %390 : vector<16x32xf32>
    %cst_176 = arith.constant -0.284496725 : f32
    %399 = vector.broadcast %cst_176 : f32 to vector<16x32xf32>
    %400 = arith.addf %398, %399 : vector<16x32xf32>
    %401 = arith.mulf %400, %390 : vector<16x32xf32>
    %cst_177 = arith.constant 0.254829586 : f32
    %402 = vector.broadcast %cst_177 : f32 to vector<16x32xf32>
    %403 = arith.addf %401, %402 : vector<16x32xf32>
    %404 = arith.mulf %403, %390 : vector<16x32xf32>
    %cst_178 = arith.constant 0.000000e+00 : f32
    %405 = vector.broadcast %cst_178 : f32 to vector<16x32xf32>
    %406 = arith.subf %405, %381 : vector<16x32xf32>
    %407 = arith.mulf %406, %381 : vector<16x32xf32>
    %408 = math.exp %407 : vector<16x32xf32>
    %409 = arith.mulf %404, %408 : vector<16x32xf32>
    %cst_179 = arith.constant 1.000000e+00 : f32
    %410 = vector.broadcast %cst_179 : f32 to vector<16x32xf32>
    %411 = arith.subf %410, %409 : vector<16x32xf32>
    %412 = arith.mulf %380, %411 : vector<16x32xf32>
    %cst_180 = arith.constant 1.000000e+00 : f32
    %413 = vector.broadcast %cst_180 : f32 to vector<16x32xf32>
    %414 = arith.addf %413, %412 : vector<16x32xf32>
    %415 = arith.mulf %373, %414 : vector<16x32xf32>
    %416 = arith.truncf %415 : vector<16x32xf32> to vector<16x32xbf16>
    %c2_181 = arith.constant 2 : index
    %c0_182 = arith.constant 0 : index
    %c0_183 = arith.constant 0 : index
    %417 = vector.load %arg11[%c2_181, %c0_182, %c0_183] : memref<4x32x32xbf16, #tpu.memory_space<vmem>>, vector<1x32x32xbf16>
    %418 = vector.shape_cast %417 : vector<1x32x32xbf16> to vector<32x32xbf16>
    %cst_184 = arith.constant dense<0.000000e+00> : vector<16x32xf32>
    %419 = tpu.matmul %416, %418, %cst_184 {dimension_numbers = #tpu.dot_dimension_numbers<[1], [0], [0], [1], [0, 0, 1, 1], [], []>} : vector<16x32xbf16>, vector<32x32xbf16>, vector<16x32xf32> -> vector<16x32xf32>
    %c2_185 = arith.constant 2 : index
    %c0_186 = arith.constant 0 : index
    %c0_187 = arith.constant 0 : index
    %420 = vector.load %arg12[%c2_185, %c0_186, %c0_187] : memref<4x1x32xf32, #tpu.memory_space<vmem>>, vector<1x1x32xf32>
    %421 = vector.shape_cast %420 : vector<1x1x32xf32> to vector<1x32xf32>
    %422 = vector.broadcast %421 : vector<1x32xf32> to vector<16x32xf32>
    %423 = arith.addf %419, %422 : vector<16x32xf32>
    %424 = arith.addf %423, %335 : vector<16x32xf32>
    %c3 = arith.constant 3 : index
    %c0_188 = arith.constant 0 : index
    %c0_189 = arith.constant 0 : index
    %425 = vector.load %arg5[%c3, %c0_188, %c0_189] : memref<4x1x32xf32, #tpu.memory_space<vmem>>, vector<1x1x32xf32>
    %426 = vector.shape_cast %425 : vector<1x1x32xf32> to vector<1x32xf32>
    %c3_190 = arith.constant 3 : index
    %c0_191 = arith.constant 0 : index
    %c0_192 = arith.constant 0 : index
    %427 = vector.load %arg6[%c3_190, %c0_191, %c0_192] : memref<4x1x32xf32, #tpu.memory_space<vmem>>, vector<1x1x32xf32>
    %428 = vector.shape_cast %427 : vector<1x1x32xf32> to vector<1x32xf32>
    %cst_193 = arith.constant dense<0.000000e+00> : vector<16xf32>
    %429 = vector.multi_reduction <add>, %424, %cst_193 [1] : vector<16x32xf32> to vector<16xf32>
    %430 = vector.shape_cast %429 : vector<16xf32> to vector<16x1xf32>
    %cst_194 = arith.constant 3.200000e+01 : f32
    %431 = vector.broadcast %cst_194 : f32 to vector<16x1xf32>
    %432 = arith.divf %430, %431 : vector<16x1xf32>
    %433 = arith.mulf %424, %424 : vector<16x32xf32>
    %cst_195 = arith.constant dense<0.000000e+00> : vector<16xf32>
    %434 = vector.multi_reduction <add>, %433, %cst_195 [1] : vector<16x32xf32> to vector<16xf32>
    %435 = vector.shape_cast %434 : vector<16xf32> to vector<16x1xf32>
    %cst_196 = arith.constant 3.200000e+01 : f32
    %436 = vector.broadcast %cst_196 : f32 to vector<16x1xf32>
    %437 = arith.divf %435, %436 : vector<16x1xf32>
    %438 = arith.mulf %432, %432 : vector<16x1xf32>
    %439 = arith.subf %437, %438 : vector<16x1xf32>
    %cst_197 = arith.constant 0.000000e+00 : f32
    %440 = vector.broadcast %cst_197 : f32 to vector<16x1xf32>
    %441 = arith.maximumf %439, %440 : vector<16x1xf32>
    %442 = vector.broadcast %432 : vector<16x1xf32> to vector<16x32xf32>
    %443 = arith.subf %424, %442 : vector<16x32xf32>
    %cst_198 = arith.constant 9.99999974E-6 : f32
    %444 = vector.broadcast %cst_198 : f32 to vector<16x1xf32>
    %445 = arith.addf %441, %444 : vector<16x1xf32>
    %446 = math.rsqrt %445 : vector<16x1xf32>
    %447 = vector.broadcast %446 : vector<16x1xf32> to vector<16x32xf32>
    %448 = arith.mulf %443, %447 : vector<16x32xf32>
    %449 = vector.broadcast %426 : vector<1x32xf32> to vector<16x32xf32>
    %450 = arith.mulf %448, %449 : vector<16x32xf32>
    %451 = vector.broadcast %428 : vector<1x32xf32> to vector<16x32xf32>
    %452 = arith.addf %450, %451 : vector<16x32xf32>
    %453 = arith.addf %452, %424 : vector<16x32xf32>
    %c3_199 = arith.constant 3 : index
    %c0_200 = arith.constant 0 : index
    %c0_201 = arith.constant 0 : index
    %454 = vector.load %arg7[%c3_199, %c0_200, %c0_201] : memref<4x1x32xf32, #tpu.memory_space<vmem>>, vector<1x1x32xf32>
    %455 = vector.shape_cast %454 : vector<1x1x32xf32> to vector<1x32xf32>
    %c3_202 = arith.constant 3 : index
    %c0_203 = arith.constant 0 : index
    %c0_204 = arith.constant 0 : index
    %456 = vector.load %arg8[%c3_202, %c0_203, %c0_204] : memref<4x1x32xf32, #tpu.memory_space<vmem>>, vector<1x1x32xf32>
    %457 = vector.shape_cast %456 : vector<1x1x32xf32> to vector<1x32xf32>
    %cst_205 = arith.constant dense<0.000000e+00> : vector<16xf32>
    %458 = vector.multi_reduction <add>, %453, %cst_205 [1] : vector<16x32xf32> to vector<16xf32>
    %459 = vector.shape_cast %458 : vector<16xf32> to vector<16x1xf32>
    %cst_206 = arith.constant 3.200000e+01 : f32
    %460 = vector.broadcast %cst_206 : f32 to vector<16x1xf32>
    %461 = arith.divf %459, %460 : vector<16x1xf32>
    %462 = arith.mulf %453, %453 : vector<16x32xf32>
    %cst_207 = arith.constant dense<0.000000e+00> : vector<16xf32>
    %463 = vector.multi_reduction <add>, %462, %cst_207 [1] : vector<16x32xf32> to vector<16xf32>
    %464 = vector.shape_cast %463 : vector<16xf32> to vector<16x1xf32>
    %cst_208 = arith.constant 3.200000e+01 : f32
    %465 = vector.broadcast %cst_208 : f32 to vector<16x1xf32>
    %466 = arith.divf %464, %465 : vector<16x1xf32>
    %467 = arith.mulf %461, %461 : vector<16x1xf32>
    %468 = arith.subf %466, %467 : vector<16x1xf32>
    %cst_209 = arith.constant 0.000000e+00 : f32
    %469 = vector.broadcast %cst_209 : f32 to vector<16x1xf32>
    %470 = arith.maximumf %468, %469 : vector<16x1xf32>
    %471 = vector.broadcast %461 : vector<16x1xf32> to vector<16x32xf32>
    %472 = arith.subf %453, %471 : vector<16x32xf32>
    %cst_210 = arith.constant 9.99999974E-6 : f32
    %473 = vector.broadcast %cst_210 : f32 to vector<16x1xf32>
    %474 = arith.addf %470, %473 : vector<16x1xf32>
    %475 = math.rsqrt %474 : vector<16x1xf32>
    %476 = vector.broadcast %475 : vector<16x1xf32> to vector<16x32xf32>
    %477 = arith.mulf %472, %476 : vector<16x32xf32>
    %478 = vector.broadcast %455 : vector<1x32xf32> to vector<16x32xf32>
    %479 = arith.mulf %477, %478 : vector<16x32xf32>
    %480 = vector.broadcast %457 : vector<1x32xf32> to vector<16x32xf32>
    %481 = arith.addf %479, %480 : vector<16x32xf32>
    %482 = arith.truncf %481 : vector<16x32xf32> to vector<16x32xbf16>
    %c3_211 = arith.constant 3 : index
    %c0_212 = arith.constant 0 : index
    %c0_213 = arith.constant 0 : index
    %483 = vector.load %arg9[%c3_211, %c0_212, %c0_213] : memref<4x32x32xbf16, #tpu.memory_space<vmem>>, vector<1x32x32xbf16>
    %484 = vector.shape_cast %483 : vector<1x32x32xbf16> to vector<32x32xbf16>
    %cst_214 = arith.constant dense<0.000000e+00> : vector<16x32xf32>
    %485 = tpu.matmul %482, %484, %cst_214 {dimension_numbers = #tpu.dot_dimension_numbers<[1], [0], [0], [1], [0, 0, 1, 1], [], []>} : vector<16x32xbf16>, vector<32x32xbf16>, vector<16x32xf32> -> vector<16x32xf32>
    %c3_215 = arith.constant 3 : index
    %c0_216 = arith.constant 0 : index
    %c0_217 = arith.constant 0 : index
    %486 = vector.load %arg10[%c3_215, %c0_216, %c0_217] : memref<4x1x32xf32, #tpu.memory_space<vmem>>, vector<1x1x32xf32>
    %487 = vector.shape_cast %486 : vector<1x1x32xf32> to vector<1x32xf32>
    %488 = vector.broadcast %487 : vector<1x32xf32> to vector<16x32xf32>
    %489 = arith.addf %485, %488 : vector<16x32xf32>
    %cst_218 = arith.constant 5.000000e-01 : f32
    %490 = vector.broadcast %cst_218 : f32 to vector<16x32xf32>
    %491 = arith.mulf %490, %489 : vector<16x32xf32>
    %cst_219 = arith.constant 0.707106769 : f32
    %492 = vector.broadcast %cst_219 : f32 to vector<16x32xf32>
    %493 = arith.mulf %489, %492 : vector<16x32xf32>
    %cst_220 = arith.constant 0.000000e+00 : f32
    %494 = vector.broadcast %cst_220 : f32 to vector<16x32xf32>
    %495 = arith.cmpf oge, %493, %494 : vector<16x32xf32>
    %cst_221 = arith.constant 1.000000e+00 : f32
    %cst_222 = arith.constant -1.000000e+00 : f32
    %496 = vector.broadcast %cst_221 : f32 to vector<16x32xf32>
    %497 = vector.broadcast %cst_222 : f32 to vector<16x32xf32>
    %498 = arith.select %495, %496, %497 : vector<16x32xi1>, vector<16x32xf32>
    %499 = math.absf %493 : vector<16x32xf32>
    %cst_223 = arith.constant 0.327591091 : f32
    %500 = vector.broadcast %cst_223 : f32 to vector<16x32xf32>
    %501 = arith.mulf %500, %499 : vector<16x32xf32>
    %cst_224 = arith.constant 1.000000e+00 : f32
    %502 = vector.broadcast %cst_224 : f32 to vector<16x32xf32>
    %503 = arith.addf %502, %501 : vector<16x32xf32>
    %504 = tpu.reciprocal %503 {approx = true} : vector<16x32xf32> -> vector<16x32xf32>
    %505 = arith.mulf %503, %504 : vector<16x32xf32>
    %cst_225 = arith.constant 2.000000e+00 : f32
    %506 = vector.broadcast %cst_225 : f32 to vector<16x32xf32>
    %507 = arith.subf %506, %505 : vector<16x32xf32>
    %508 = arith.mulf %504, %507 : vector<16x32xf32>
    %cst_226 = arith.constant 1.06140542 : f32
    %509 = vector.broadcast %cst_226 : f32 to vector<16x32xf32>
    %510 = arith.mulf %509, %508 : vector<16x32xf32>
    %cst_227 = arith.constant -1.45315206 : f32
    %511 = vector.broadcast %cst_227 : f32 to vector<16x32xf32>
    %512 = arith.addf %510, %511 : vector<16x32xf32>
    %513 = arith.mulf %512, %508 : vector<16x32xf32>
    %cst_228 = arith.constant 1.42141378 : f32
    %514 = vector.broadcast %cst_228 : f32 to vector<16x32xf32>
    %515 = arith.addf %513, %514 : vector<16x32xf32>
    %516 = arith.mulf %515, %508 : vector<16x32xf32>
    %cst_229 = arith.constant -0.284496725 : f32
    %517 = vector.broadcast %cst_229 : f32 to vector<16x32xf32>
    %518 = arith.addf %516, %517 : vector<16x32xf32>
    %519 = arith.mulf %518, %508 : vector<16x32xf32>
    %cst_230 = arith.constant 0.254829586 : f32
    %520 = vector.broadcast %cst_230 : f32 to vector<16x32xf32>
    %521 = arith.addf %519, %520 : vector<16x32xf32>
    %522 = arith.mulf %521, %508 : vector<16x32xf32>
    %cst_231 = arith.constant 0.000000e+00 : f32
    %523 = vector.broadcast %cst_231 : f32 to vector<16x32xf32>
    %524 = arith.subf %523, %499 : vector<16x32xf32>
    %525 = arith.mulf %524, %499 : vector<16x32xf32>
    %526 = math.exp %525 : vector<16x32xf32>
    %527 = arith.mulf %522, %526 : vector<16x32xf32>
    %cst_232 = arith.constant 1.000000e+00 : f32
    %528 = vector.broadcast %cst_232 : f32 to vector<16x32xf32>
    %529 = arith.subf %528, %527 : vector<16x32xf32>
    %530 = arith.mulf %498, %529 : vector<16x32xf32>
    %cst_233 = arith.constant 1.000000e+00 : f32
    %531 = vector.broadcast %cst_233 : f32 to vector<16x32xf32>
    %532 = arith.addf %531, %530 : vector<16x32xf32>
    %533 = arith.mulf %491, %532 : vector<16x32xf32>
    %534 = arith.truncf %533 : vector<16x32xf32> to vector<16x32xbf16>
    %c3_234 = arith.constant 3 : index
    %c0_235 = arith.constant 0 : index
    %c0_236 = arith.constant 0 : index
    %535 = vector.load %arg11[%c3_234, %c0_235, %c0_236] : memref<4x32x32xbf16, #tpu.memory_space<vmem>>, vector<1x32x32xbf16>
    %536 = vector.shape_cast %535 : vector<1x32x32xbf16> to vector<32x32xbf16>
    %cst_237 = arith.constant dense<0.000000e+00> : vector<16x32xf32>
    %537 = tpu.matmul %534, %536, %cst_237 {dimension_numbers = #tpu.dot_dimension_numbers<[1], [0], [0], [1], [0, 0, 1, 1], [], []>} : vector<16x32xbf16>, vector<32x32xbf16>, vector<16x32xf32> -> vector<16x32xf32>
    %c3_238 = arith.constant 3 : index
    %c0_239 = arith.constant 0 : index
    %c0_240 = arith.constant 0 : index
    %538 = vector.load %arg12[%c3_238, %c0_239, %c0_240] : memref<4x1x32xf32, #tpu.memory_space<vmem>>, vector<1x1x32xf32>
    %539 = vector.shape_cast %538 : vector<1x1x32xf32> to vector<1x32xf32>
    %540 = vector.broadcast %539 : vector<1x32xf32> to vector<16x32xf32>
    %541 = arith.addf %537, %540 : vector<16x32xf32>
    %542 = arith.addf %541, %453 : vector<16x32xf32>
    %543 = vector.extract_strided_slice %542 {offsets = [0, 0], sizes = [4, 32], strides = [1, 1]} : vector<16x32xf32> to vector<4x32xf32>
    %544 = vector.extract_strided_slice %542 {offsets = [4, 0], sizes = [4, 32], strides = [1, 1]} : vector<16x32xf32> to vector<4x32xf32>
    %545 = tpu.concatenate %543, %544 in 1 : vector<4x32xf32>, vector<4x32xf32> -> vector<4x64xf32>
    %546 = vector.extract_strided_slice %542 {offsets = [8, 0], sizes = [4, 32], strides = [1, 1]} : vector<16x32xf32> to vector<4x32xf32>
    %547 = vector.extract_strided_slice %542 {offsets = [12, 0], sizes = [4, 32], strides = [1, 1]} : vector<16x32xf32> to vector<4x32xf32>
    %548 = tpu.concatenate %546, %547 in 1 : vector<4x32xf32>, vector<4x32xf32> -> vector<4x64xf32>
    %549 = tpu.concatenate %545, %548 in 0 : vector<4x64xf32>, vector<4x64xf32> -> vector<8x64xf32>
    %c0_241 = arith.constant 0 : index
    %c0_242 = arith.constant 0 : index
    %550 = vector.load %arg13[%c0_241, %c0_242] : memref<1x64xf32, #tpu.memory_space<vmem>>, vector<1x64xf32>
    %c0_243 = arith.constant 0 : index
    %c0_244 = arith.constant 0 : index
    %551 = vector.load %arg14[%c0_243, %c0_244] : memref<1x64xf32, #tpu.memory_space<vmem>>, vector<1x64xf32>
    %cst_245 = arith.constant dense<0.000000e+00> : vector<8xf32>
    %552 = vector.multi_reduction <add>, %549, %cst_245 [1] : vector<8x64xf32> to vector<8xf32>
    %553 = vector.shape_cast %552 : vector<8xf32> to vector<8x1xf32>
    %cst_246 = arith.constant 6.400000e+01 : f32
    %554 = vector.broadcast %cst_246 : f32 to vector<8x1xf32>
    %555 = arith.divf %553, %554 : vector<8x1xf32>
    %556 = arith.mulf %549, %549 : vector<8x64xf32>
    %cst_247 = arith.constant dense<0.000000e+00> : vector<8xf32>
    %557 = vector.multi_reduction <add>, %556, %cst_247 [1] : vector<8x64xf32> to vector<8xf32>
    %558 = vector.shape_cast %557 : vector<8xf32> to vector<8x1xf32>
    %cst_248 = arith.constant 6.400000e+01 : f32
    %559 = vector.broadcast %cst_248 : f32 to vector<8x1xf32>
    %560 = arith.divf %558, %559 : vector<8x1xf32>
    %561 = arith.mulf %555, %555 : vector<8x1xf32>
    %562 = arith.subf %560, %561 : vector<8x1xf32>
    %cst_249 = arith.constant 0.000000e+00 : f32
    %563 = vector.broadcast %cst_249 : f32 to vector<8x1xf32>
    %564 = arith.maximumf %562, %563 : vector<8x1xf32>
    %565 = vector.broadcast %555 : vector<8x1xf32> to vector<8x64xf32>
    %566 = arith.subf %549, %565 : vector<8x64xf32>
    %cst_250 = arith.constant 9.99999974E-6 : f32
    %567 = vector.broadcast %cst_250 : f32 to vector<8x1xf32>
    %568 = arith.addf %564, %567 : vector<8x1xf32>
    %569 = math.rsqrt %568 : vector<8x1xf32>
    %570 = vector.broadcast %569 : vector<8x1xf32> to vector<8x64xf32>
    %571 = arith.mulf %566, %570 : vector<8x64xf32>
    %572 = vector.broadcast %550 : vector<1x64xf32> to vector<8x64xf32>
    %573 = arith.mulf %571, %572 : vector<8x64xf32>
    %574 = vector.broadcast %551 : vector<1x64xf32> to vector<8x64xf32>
    %575 = arith.addf %573, %574 : vector<8x64xf32>
    %576 = arith.truncf %575 : vector<8x64xf32> to vector<8x64xbf16>
    %c0_251 = arith.constant 0 : index
    %c0_252 = arith.constant 0 : index
    %577 = vector.load %arg15[%c0_251, %c0_252] : memref<64x32xbf16, #tpu.memory_space<vmem>>, vector<64x32xbf16>
    %cst_253 = arith.constant dense<0.000000e+00> : vector<8x32xf32>
    %578 = tpu.matmul %576, %577, %cst_253 {dimension_numbers = #tpu.dot_dimension_numbers<[1], [0], [0], [1], [0, 0, 1, 1], [], []>} : vector<8x64xbf16>, vector<64x32xbf16>, vector<8x32xf32> -> vector<8x32xf32>
    %c0_254 = arith.constant 0 : index
    %c0_255 = arith.constant 0 : index
    %579 = vector.load %arg16[%c0_254, %c0_255] : memref<8x32xf32, #tpu.memory_space<vmem>>, vector<8x32xf32>
    tpu.vector_store %arg16[%c0_254, %c0_255], %578 {strides = array<i32>} : memref<8x32xf32, #tpu.memory_space<vmem>>, vector<8x32xf32>,
    return
  }
}

</mosaic_0001>

<llo_original>
// kernel: _lambda_.1
$region0: #{_lambda_.1}
  #allocation0 [shape = 'u32[]', space=smem, size = 0x4, offset = 0x4, fixed_abs, tag = 'smem constant byte address 0x4 - core index']
  #allocation1 [shape = 'u32[72,128]{1,0:T(1,128)}', space=vmem, size = 0x9000, scoped, tag = 'internal scratch']
  %s0 = inlined_call_operand.vmem [shape: bf16[32,64], index: 0, kind: input, shape index: {}]
  %s1 = inlined_call_operand.vmem [shape: bf16[64,32], index: 1, kind: input, shape index: {}]
  %s2 = inlined_call_operand.vmem [shape: f32[16,32], index: 2, kind: input, shape index: {}]
  %s3 = inlined_call_operand.vmem [shape: f32[1,32], index: 3, kind: input, shape index: {}]
  %s4 = inlined_call_operand.vmem [shape: f32[1,32], index: 4, kind: input, shape index: {}]
  %s5 = inlined_call_operand.vmem [shape: f32[4,1,32], index: 5, kind: input, shape index: {}]
  %s6 = inlined_call_operand.vmem [shape: f32[4,1,32], index: 6, kind: input, shape index: {}]
  %s7 = inlined_call_operand.vmem [shape: f32[4,1,32], index: 7, kind: input, shape index: {}]
  %s8 = inlined_call_operand.vmem [shape: f32[4,1,32], index: 8, kind: input, shape index: {}]
  %s9 = inlined_call_operand.vmem [shape: bf16[4,32,32], index: 9, kind: input, shape index: {}]
  %s10 = inlined_call_operand.vmem [shape: f32[4,1,32], index: 10, kind: input, shape index: {}]
  %s11 = inlined_call_operand.vmem [shape: bf16[4,32,32], index: 11, kind: input, shape index: {}]
  %s12 = inlined_call_operand.vmem [shape: f32[4,1,32], index: 12, kind: input, shape index: {}]
  %s13 = inlined_call_operand.vmem [shape: f32[1,64], index: 13, kind: input, shape index: {}]
  %s14 = inlined_call_operand.vmem [shape: f32[1,64], index: 14, kind: input, shape index: {}]
  %s15 = inlined_call_operand.vmem [shape: bf16[64,32], index: 15, kind: input, shape index: {}]
  %s16 = inlined_call_operand.hbm [shape: f32[8,32], index: 16, kind: output, shape index: {}]
  %s17 = sld [smem:[#allocation0]]
  $region74: #{_lambda_.1} parent=0
    _
  %s19 = ssub.s32 1, %s17
  %s20 = scalar_select 0, %s19, %s17
  $region1: #{_lambda_.1} parent=0
    #allocation2 [shape = 'u8[4096]{0}', space=vmem, size = 0x1000, scoped, tag = 'output window, operand 0, single buffered']
    #allocation3 [shape = 's32[1]{0}', space=sflag, size = 0x4, scoped, tag = 'scoped memory for _lambda_.1']
    %21 = vsyncpa [#allocation3], 0
    // Predicated region
    $region2: #{_lambda_.1} parent=1 // pred_check
      _
    $region3: #{_lambda_.1} parent=1 // pred_check_branch
      %23 = sbr.rel (0) target = $region5
    $region4: #{_lambda_.1} parent=1 // pred_region
      _
    $region5: #{_lambda_.1} parent=1 // pred_fallthru
      _
    // Predicated region
    $region6: #{_lambda_.1} parent=1 // pred_check
      _
    $region7: #{_lambda_.1} parent=1 // pred_check_branch
      %25 = sbr.rel (0) target = $region9
    $region8: #{_lambda_.1} parent=1 // pred_region
      _
    $region9: #{_lambda_.1} parent=1 // pred_fallthru
      _
    // Predicated region
    $region10: #{_lambda_.1} parent=1 // pred_check
      _
    $region11: #{_lambda_.1} parent=1 // pred_check_branch
      %27 = sbr.rel (0) target = $region13
    $region12: #{_lambda_.1} parent=1 // pred_region
      _
    $region13: #{_lambda_.1} parent=1 // pred_fallthru
      _
    // Predicated region
    $region14: #{_lambda_.1} parent=1 // pred_check
      _
    $region15: #{_lambda_.1} parent=1 // pred_check_branch
      %29 = sbr.rel (0) target = $region17
    $region16: #{_lambda_.1} parent=1 // pred_region
      _
    $region17: #{_lambda_.1} parent=1 // pred_fallthru
      _
    // Predicated region
    $region18: #{_lambda_.1} parent=1 // pred_check
      _
    $region19: #{_lambda_.1} parent=1 // pred_check_branch
      %31 = sbr.rel (0) target = $region21
    $region20: #{_lambda_.1} parent=1 // pred_region
      _
    $region21: #{_lambda_.1} parent=1 // pred_fallthru
      _
    // Predicated region
    $region22: #{_lambda_.1} parent=1 // pred_check
      _
    $region23: #{_lambda_.1} parent=1 // pred_check_branch
      %33 = sbr.rel (0) target = $region25
    $region24: #{_lambda_.1} parent=1 // pred_region
      _
    $region25: #{_lambda_.1} parent=1 // pred_fallthru
      _
    // Predicated region
    $region26: #{_lambda_.1} parent=1 // pred_check
      _
    $region27: #{_lambda_.1} parent=1 // pred_check_branch
      %35 = sbr.rel (0) target = $region29
    $region28: #{_lambda_.1} parent=1 // pred_region
      _
    $region29: #{_lambda_.1} parent=1 // pred_fallthru
      _
    // Predicated region
    $region30: #{_lambda_.1} parent=1 // pred_check
      _
    $region31: #{_lambda_.1} parent=1 // pred_check_branch
      %37 = sbr.rel (0) target = $region33
    $region32: #{_lambda_.1} parent=1 // pred_region
      _
    $region33: #{_lambda_.1} parent=1 // pred_fallthru
      _
    // Predicated region
    $region34: #{_lambda_.1} parent=1 // pred_check
      _
    $region35: #{_lambda_.1} parent=1 // pred_check_branch
      %39 = sbr.rel (0) target = $region37
    $region36: #{_lambda_.1} parent=1 // pred_region
      _
    $region37: #{_lambda_.1} parent=1 // pred_fallthru
      _
    // Predicated region
    $region38: #{_lambda_.1} parent=1 // pred_check
      _
    $region39: #{_lambda_.1} parent=1 // pred_check_branch
      %41 = sbr.rel (0) target = $region41
    $region40: #{_lambda_.1} parent=1 // pred_region
      _
    $region41: #{_lambda_.1} parent=1 // pred_fallthru
      _
    // Predicated region
    $region42: #{_lambda_.1} parent=1 // pred_check
      _
    $region43: #{_lambda_.1} parent=1 // pred_check_branch
      %43 = sbr.rel (0) target = $region45
    $region44: #{_lambda_.1} parent=1 // pred_region
      _
    $region45: #{_lambda_.1} parent=1 // pred_fallthru
      _
    // Predicated region
    $region46: #{_lambda_.1} parent=1 // pred_check
      _
    $region47: #{_lambda_.1} parent=1 // pred_check_branch
      %45 = sbr.rel (0) target = $region49
    $region48: #{_lambda_.1} parent=1 // pred_region
      _
    $region49: #{_lambda_.1} parent=1 // pred_fallthru
      _
    // Predicated region
    $region50: #{_lambda_.1} parent=1 // pred_check
      _
    $region51: #{_lambda_.1} parent=1 // pred_check_branch
      %47 = sbr.rel (0) target = $region53
    $region52: #{_lambda_.1} parent=1 // pred_region
      _
    $region53: #{_lambda_.1} parent=1 // pred_fallthru
      _
    // Predicated region
    $region54: #{_lambda_.1} parent=1 // pred_check
      _
    $region55: #{_lambda_.1} parent=1 // pred_check_branch
      %49 = sbr.rel (0) target = $region57
    $region56: #{_lambda_.1} parent=1 // pred_region
      _
    $region57: #{_lambda_.1} parent=1 // pred_fallthru
      _
    // Predicated region
    $region58: #{_lambda_.1} parent=1 // pred_check
      _
    $region59: #{_lambda_.1} parent=1 // pred_check_branch
      %51 = sbr.rel (0) target = $region61
    $region60: #{_lambda_.1} parent=1 // pred_region
      _
    $region61: #{_lambda_.1} parent=1 // pred_fallthru
      _
    // Predicated region
    $region62: #{_lambda_.1} parent=1 // pred_check
      _
    $region63: #{_lambda_.1} parent=1 // pred_check_branch
      %53 = sbr.rel (0) target = $region65
    $region64: #{_lambda_.1} parent=1 // pred_region
      _
    $region65: #{_lambda_.1} parent=1 // pred_fallthru
      _
    %v55 = vld [vmem:[%s0] sm:$0xf]
    %v56 = vld [vmem:[%s0 + $0x4] sm:$0xf]
    %v57 = vld [vmem:[%s0 + $0x8] sm:$0xf]
    %v58 = vld [vmem:[%s0 + $0xc] sm:$0xf]
    %v59 = vld [vmem:[%s1] sm:$0xf]
    %v60 = vld [vmem:[%s1 + $0x4] sm:$0xf]
    %v61 = vld [vmem:[%s1 + $0x8] sm:$0xf]
    %v62 = vld [vmem:[%s1 + $0xc] sm:$0xf]
    %v63 = vld [vmem:[%s1 + $0x10] sm:$0xf]
    %v64 = vld [vmem:[%s1 + $0x14] sm:$0xf]
    %v65 = vld [vmem:[%s1 + $0x18] sm:$0xf]
    %v66 = vld [vmem:[%s1 + $0x1c] sm:$0xf]
    %v71 = vunpack.c.l.b16 %v55
    %v72 = vunpack.c.l.b16 %v56
    %v73 = vunpack.c.l.b16 %v57
    %v74 = vunpack.c.l.b16 %v58
    %v75 = vpack.c.b16 %v72, %v71
    %v76 = vpack.c.b16 %v74, %v73
    %v85 = vunpack.c.l.b16 %v59
    %v86 = vunpack.c.l.b16 %v60
    %v87 = vunpack.c.l.b16 %v61
    %v88 = vunpack.c.l.b16 %v62
    %v89 = vunpack.c.l.b16 %v63
    %v90 = vunpack.c.l.b16 %v64
    %v91 = vunpack.c.l.b16 %v65
    %v92 = vunpack.c.l.b16 %v66
    %v93 = vpack.c.b16 %v86, %v85
    %v94 = vpack.c.b16 %v88, %v87
    %v95 = vpack.c.b16 %v90, %v89
    %v96 = vpack.c.b16 %v92, %v91
    %vm101 = vcmask 523264
    %v103 = vsel %vm101, %v75, 0
    %v106 = vsel %vm101, %v76, 0
    %108 = vmatpush.bf16.msra.mxu0 0
    %109 = vmatpush.bf16.msra.mxu0 0
    %110 = vmatpush.bf16.msra.mxu0 0
    %111 = vmatpush.bf16.msra.mxu0 0
    %112 = vmatpush.bf16.msra.mxu0 %v96
    %113 = vmatpush.bf16.msra.mxu0 %v95
    %114 = vmatpush.bf16.msra.mxu0 %v94
    %115 = vmatpush.bf16.msra.mxu0 %v93
    %116 = vmatmul.bf16.gmra.mxu0 %v103
    %v117 = vpop.f32.mrf.mxu0
    %v118 = vadd.f32 0.0, %v117
    %v119 = vpop.f32.mrf.mxu0
    %v120 = vadd.f32 0.0, %v119
    %121 = vmatmul.bf16.gmra.mxu0 %v106
    %v122 = vpop.f32.mrf.mxu0
    %v123 = vadd.f32 0.0, %v122
    %v124 = vpop.f32.mrf.mxu0
    %v125 = vadd.f32 0.0, %v124
    %126 = vdwg.mxu0
    %v127 = vld [vmem:[%s2] sm:$0xff]
    %v128 = vld [vmem:[%s2 + $0x8] sm:$0xff]
    %v129 = vadd.f32 %v118, %v127
    %v130 = vadd.f32 %v120, %v128
    %v131 = vadd.f32 %v123, %v127
    %v132 = vadd.f32 %v125, %v128
    %v133 = vld [vmem:[%s3] sm:$0x1]
    %v134 = vld [vmem:[%s4] sm:$0x1]
    %vm135 = vcmask 261120
    %v136 = vsel %vm135, %v129, 0.0
    %137 = vadd.xlane.f32.xlu0 %v136
    %v138 = vpop.xlane.xlu0 %137
    %v139 = vsel %vm135, %v130, 0.0
    %140 = vadd.xlane.f32.xlu0 %v139
    %v141 = vpop.xlane.xlu0 %140
    %v142 = vsel %vm135, %v131, 0.0
    %143 = vadd.xlane.f32.xlu0 %v142
    %v144 = vpop.xlane.xlu0 %143
    %v145 = vsel %vm135, %v132, 0.0
    %146 = vadd.xlane.f32.xlu0 %v145
    %v147 = vpop.xlane.xlu0 %146
    %v148 = vrcp.pop 32.0
    %v149 = vmul.f32 32.0, %v148
    %v150 = vsub.f32 1.0, %v149
    %v151 = vmul.f32 %v148, %v150
    %v152 = vadd.f32 %v148, %v151
    %vm153 = vweird.f32 %v148
    %v154 = vsel %vm153, %v148, %v152
    %v155 = vmul.f32 %v138, %v154
    %v156 = vmul.f32 %v141, %v154
    %v157 = vmul.f32 %v144, %v154
    %v158 = vmul.f32 %v147, %v154
    %v159 = vmul.f32 %v129, %v129
    %v160 = vmul.f32 %v130, %v130
    %v161 = vmul.f32 %v131, %v131
    %v162 = vmul.f32 %v132, %v132
    %v163 = vsel %vm135, %v159, 0.0
    %164 = vadd.xlane.f32.xlu0 %v163
    %v165 = vpop.xlane.xlu0 %164
    %v166 = vsel %vm135, %v160, 0.0
    %167 = vadd.xlane.f32.xlu0 %v166
    %v168 = vpop.xlane.xlu0 %167
    %v169 = vsel %vm135, %v161, 0.0
    %170 = vadd.xlane.f32.xlu0 %v169
    %v171 = vpop.xlane.xlu0 %170
    %v172 = vsel %vm135, %v162, 0.0
    %173 = vadd.xlane.f32.xlu0 %v172
    %v174 = vpop.xlane.xlu0 %173
    %v175 = vmul.f32 %v165, %v154
    %v176 = vmul.f32 %v168, %v154
    %v177 = vmul.f32 %v171, %v154
    %v178 = vmul.f32 %v174, %v154
    %v179 = vmul.f32 %v155, %v155
    %v180 = vmul.f32 %v156, %v156
    %v181 = vmul.f32 %v157, %v157
    %v182 = vmul.f32 %v158, %v158
    %v183 = vsub.f32 %v175, %v179
    %v184 = vsub.f32 %v176, %v180
    %v185 = vsub.f32 %v177, %v181
    %v186 = vsub.f32 %v178, %v182
    %v187 = vmax.f32 %v183, 0.0
    %v188 = vmax.f32 %v184, 0.0
    %v189 = vmax.f32 %v185, 0.0
    %v190 = vmax.f32 %v186, 0.0
    %v191 = vsub.f32 %v129, %v155
    %v192 = vsub.f32 %v130, %v156
    %v193 = vsub.f32 %v131, %v157
    %v194 = vsub.f32 %v132, %v158
    %v195 = vadd.f32 %v187, 1e-12
    %v196 = vadd.f32 %v188, 1e-12
    %v197 = vadd.f32 %v189, 1e-12
    %v198 = vadd.f32 %v190, 1e-12
    %v199 = vrsqrt.pop %v195
    %v200 = vmul.f32 %v199, %v195
    %v201 = vmul.f32 %v200, %v199
    %v202 = vmul.f32 0.5, %v201
    %v203 = vsub.f32 1.5, %v202
    %v204 = vmul.f32 %v199, %v203
    %vm205 = vweird.f32 %v195
    %vm206 = vweird.f32 %v199
    %vm207 = vmor %vm205, %vm206
    %v208 = vsel %vm207, %v199, %v204
    %v209 = vrsqrt.pop %v196
    %v210 = vmul.f32 %v209, %v196
    %v211 = vmul.f32 %v210, %v209
    %v212 = vmul.f32 0.5, %v211
    %v213 = vsub.f32 1.5, %v212
    %v214 = vmul.f32 %v209, %v213
    %vm215 = vweird.f32 %v196
    %vm216 = vweird.f32 %v209
    %vm217 = vmor %vm215, %vm216
    %v218 = vsel %vm217, %v209, %v214
    %v219 = vrsqrt.pop %v197
    %v220 = vmul.f32 %v219, %v197
    %v221 = vmul.f32 %v220, %v219
    %v222 = vmul.f32 0.5, %v221
    %v223 = vsub.f32 1.5, %v222
    %v224 = vmul.f32 %v219, %v223
    %vm225 = vweird.f32 %v197
    %vm226 = vweird.f32 %v219
    %vm227 = vmor %vm225, %vm226
    %v228 = vsel %vm227, %v219, %v224
    %v229 = vrsqrt.pop %v198
    %v230 = vmul.f32 %v229, %v198
    %v231 = vmul.f32 %v230, %v229
    %v232 = vmul.f32 0.5, %v231
    %v233 = vsub.f32 1.5, %v232
    %v234 = vmul.f32 %v229, %v233
    %vm235 = vweird.f32 %v198
    %vm236 = vweird.f32 %v229
    %vm237 = vmor %vm235, %vm236
    %v238 = vsel %vm237, %v229, %v234
    %v239 = vmul.f32 %v191, %v208
    %v240 = vmul.f32 %v192, %v218
    %v241 = vmul.f32 %v193, %v228
    %v242 = vmul.f32 %v194, %v238
    %v244 = vperm.slane %v133, 0
    %v246 = vmul.f32 %v239, %v244
    %v247 = vmul.f32 %v240, %v244
    %v248 = vmul.f32 %v241, %v244
    %v249 = vmul.f32 %v242, %v244
    %v251 = vperm.slane %v134, 0
    %v253 = vadd.f32 %v246, %v251
    %v254 = vadd.f32 %v247, %v251
    %v255 = vadd.f32 %v248, %v251
    %v256 = vadd.f32 %v249, %v251
    %v257 = vld [vmem:[%s5] sm:$0x1]
    %v258 = vld [vmem:[%s6] sm:$0x1]
    %v259 = vsel %vm135, %v253, 0.0
    %260 = vadd.xlane.f32.xlu0 %v259
    %v261 = vpop.xlane.xlu0 %260
    %v262 = vsel %vm135, %v254, 0.0
    %263 = vadd.xlane.f32.xlu0 %v262
    %v264 = vpop.xlane.xlu0 %263
    %v265 = vsel %vm135, %v255, 0.0
    %266 = vadd.xlane.f32.xlu0 %v265
    %v267 = vpop.xlane.xlu0 %266
    %v268 = vsel %vm135, %v256, 0.0
    %269 = vadd.xlane.f32.xlu0 %v268
    %v270 = vpop.xlane.xlu0 %269
    %v271 = vmul.f32 %v261, %v154
    %v272 = vmul.f32 %v264, %v154
    %v273 = vmul.f32 %v267, %v154
    %v274 = vmul.f32 %v270, %v154
    %v275 = vmul.f32 %v253, %v253
    %v276 = vmul.f32 %v254, %v254
    %v277 = vmul.f32 %v255, %v255
    %v278 = vmul.f32 %v256, %v256
    %v279 = vsel %vm135, %v275, 0.0
    %280 = vadd.xlane.f32.xlu0 %v279
    %v281 = vpop.xlane.xlu0 %280
    %v282 = vsel %vm135, %v276, 0.0
    %283 = vadd.xlane.f32.xlu0 %v282
    %v284 = vpop.xlane.xlu0 %283
    %v285 = vsel %vm135, %v277, 0.0
    %286 = vadd.xlane.f32.xlu0 %v285
    %v287 = vpop.xlane.xlu0 %286
    %v288 = vsel %vm135, %v278, 0.0
    %289 = vadd.xlane.f32.xlu0 %v288
    %v290 = vpop.xlane.xlu0 %289
    %v291 = vmul.f32 %v281, %v154
    %v292 = vmul.f32 %v284, %v154
    %v293 = vmul.f32 %v287, %v154
    %v294 = vmul.f32 %v290, %v154
    %v295 = vmul.f32 %v271, %v271
    %v296 = vmul.f32 %v272, %v272
    %v297 = vmul.f32 %v273, %v273
    %v298 = vmul.f32 %v274, %v274
    %v299 = vsub.f32 %v291, %v295
    %v300 = vsub.f32 %v292, %v296
    %v301 = vsub.f32 %v293, %v297
    %v302 = vsub.f32 %v294, %v298
    %v303 = vmax.f32 %v299, 0.0
    %v304 = vmax.f32 %v300, 0.0
    %v305 = vmax.f32 %v301, 0.0
    %v306 = vmax.f32 %v302, 0.0
    %v307 = vsub.f32 %v253, %v271
    %v308 = vsub.f32 %v254, %v272
    %v309 = vsub.f32 %v255, %v273
    %v310 = vsub.f32 %v256, %v274
    %v311 = vadd.f32 %v303, 1e-05
    %v312 = vadd.f32 %v304, 1e-05
    %v313 = vadd.f32 %v305, 1e-05
    %v314 = vadd.f32 %v306, 1e-05
    %v315 = vrsqrt.pop %v311
    %v316 = vmul.f32 %v315, %v311
    %v317 = vmul.f32 %v316, %v315
    %v318 = vmul.f32 0.5, %v317
    %v319 = vsub.f32 1.5, %v318
    %v320 = vmul.f32 %v315, %v319
    %vm321 = vweird.f32 %v311
    %vm322 = vweird.f32 %v315
    %vm323 = vmor %vm321, %vm322
    %v324 = vsel %vm323, %v315, %v320
    %v325 = vrsqrt.pop %v312
    %v326 = vmul.f32 %v325, %v312
    %v327 = vmul.f32 %v326, %v325
    %v328 = vmul.f32 0.5, %v327
    %v329 = vsub.f32 1.5, %v328
    %v330 = vmul.f32 %v325, %v329
    %vm331 = vweird.f32 %v312
    %vm332 = vweird.f32 %v325
    %vm333 = vmor %vm331, %vm332
    %v334 = vsel %vm333, %v325, %v330
    %v335 = vrsqrt.pop %v313
    %v336 = vmul.f32 %v335, %v313
    %v337 = vmul.f32 %v336, %v335
    %v338 = vmul.f32 0.5, %v337
    %v339 = vsub.f32 1.5, %v338
    %v340 = vmul.f32 %v335, %v339
    %vm341 = vweird.f32 %v313
    %vm342 = vweird.f32 %v335
    %vm343 = vmor %vm341, %vm342
    %v344 = vsel %vm343, %v335, %v340
    %v345 = vrsqrt.pop %v314
    %v346 = vmul.f32 %v345, %v314
    %v347 = vmul.f32 %v346, %v345
    %v348 = vmul.f32 0.5, %v347
    %v349 = vsub.f32 1.5, %v348
    %v350 = vmul.f32 %v345, %v349
    %vm351 = vweird.f32 %v314
    %vm352 = vweird.f32 %v345
    %vm353 = vmor %vm351, %vm352
    %v354 = vsel %vm353, %v345, %v350
    %v355 = vmul.f32 %v307, %v324
    %v356 = vmul.f32 %v308, %v334
    %v357 = vmul.f32 %v309, %v344
    %v358 = vmul.f32 %v310, %v354
    %v360 = vperm.slane %v257, 0
    %v362 = vmul.f32 %v355, %v360
    %v363 = vmul.f32 %v356, %v360
    %v364 = vmul.f32 %v357, %v360
    %v365 = vmul.f32 %v358, %v360
    %v367 = vperm.slane %v258, 0
    %v369 = vadd.f32 %v362, %v367
    %v370 = vadd.f32 %v363, %v367
    %v371 = vadd.f32 %v364, %v367
    %v372 = vadd.f32 %v365, %v367
    %v373 = vadd.f32 %v369, %v253
    %v374 = vadd.f32 %v370, %v254
    %v375 = vadd.f32 %v371, %v255
    %v376 = vadd.f32 %v372, %v256
    %v377 = vld [vmem:[%s7] sm:$0x1]
    %v378 = vld [vmem:[%s8] sm:$0x1]
    %v379 = vsel %vm135, %v373, 0.0
    %380 = vadd.xlane.f32.xlu0 %v379
    %v381 = vpop.xlane.xlu0 %380
    %v382 = vsel %vm135, %v374, 0.0
    %383 = vadd.xlane.f32.xlu0 %v382
    %v384 = vpop.xlane.xlu0 %383
    %v385 = vsel %vm135, %v375, 0.0
    %386 = vadd.xlane.f32.xlu0 %v385
    %v387 = vpop.xlane.xlu0 %386
    %v388 = vsel %vm135, %v376, 0.0
    %389 = vadd.xlane.f32.xlu0 %v388
    %v390 = vpop.xlane.xlu0 %389
    %v391 = vmul.f32 %v381, %v154
    %v392 = vmul.f32 %v384, %v154
    %v393 = vmul.f32 %v387, %v154
    %v394 = vmul.f32 %v390, %v154
    %v395 = vmul.f32 %v373, %v373
    %v396 = vmul.f32 %v374, %v374
    %v397 = vmul.f32 %v375, %v375
    %v398 = vmul.f32 %v376, %v376
    %v399 = vsel %vm135, %v395, 0.0
    %400 = vadd.xlane.f32.xlu0 %v399
    %v401 = vpop.xlane.xlu0 %400
    %v402 = vsel %vm135, %v396, 0.0
    %403 = vadd.xlane.f32.xlu0 %v402
    %v404 = vpop.xlane.xlu0 %403
    %v405 = vsel %vm135, %v397, 0.0
    %406 = vadd.xlane.f32.xlu0 %v405
    %v407 = vpop.xlane.xlu0 %406
    %v408 = vsel %vm135, %v398, 0.0
    %409 = vadd.xlane.f32.xlu0 %v408
    %v410 = vpop.xlane.xlu0 %409
    %v411 = vmul.f32 %v401, %v154
    %v412 = vmul.f32 %v404, %v154
    %v413 = vmul.f32 %v407, %v154
    %v414 = vmul.f32 %v410, %v154
    %v415 = vmul.f32 %v391, %v391
    %v416 = vmul.f32 %v392, %v392
    %v417 = vmul.f32 %v393, %v393
    %v418 = vmul.f32 %v394, %v394
    %v419 = vsub.f32 %v411, %v415
    %v420 = vsub.f32 %v412, %v416
    %v421 = vsub.f32 %v413, %v417
    %v422 = vsub.f32 %v414, %v418
    %v423 = vmax.f32 %v419, 0.0
    %v424 = vmax.f32 %v420, 0.0
    %v425 = vmax.f32 %v421, 0.0
    %v426 = vmax.f32 %v422, 0.0
    %v427 = vsub.f32 %v373, %v391
    %v428 = vsub.f32 %v374, %v392
    %v429 = vsub.f32 %v375, %v393
    %v430 = vsub.f32 %v376, %v394
    %v431 = vadd.f32 %v423, 1e-05
    %v432 = vadd.f32 %v424, 1e-05
    %v433 = vadd.f32 %v425, 1e-05
    %v434 = vadd.f32 %v426, 1e-05
    %v435 = vrsqrt.pop %v431
    %v436 = vmul.f32 %v435, %v431
    %v437 = vmul.f32 %v436, %v435
    %v438 = vmul.f32 0.5, %v437
    %v439 = vsub.f32 1.5, %v438
    %v440 = vmul.f32 %v435, %v439
    %vm441 = vweird.f32 %v431
    %vm442 = vweird.f32 %v435
    %vm443 = vmor %vm441, %vm442
    %v444 = vsel %vm443, %v435, %v440
    %v445 = vrsqrt.pop %v432
    %v446 = vmul.f32 %v445, %v432
    %v447 = vmul.f32 %v446, %v445
    %v448 = vmul.f32 0.5, %v447
    %v449 = vsub.f32 1.5, %v448
    %v450 = vmul.f32 %v445, %v449
    %vm451 = vweird.f32 %v432
    %vm452 = vweird.f32 %v445
    %vm453 = vmor %vm451, %vm452
    %v454 = vsel %vm453, %v445, %v450
    %v455 = vrsqrt.pop %v433
    %v456 = vmul.f32 %v455, %v433
    %v457 = vmul.f32 %v456, %v455
    %v458 = vmul.f32 0.5, %v457
    %v459 = vsub.f32 1.5, %v458
    %v460 = vmul.f32 %v455, %v459
    %vm461 = vweird.f32 %v433
    %vm462 = vweird.f32 %v455
    %vm463 = vmor %vm461, %vm462
    %v464 = vsel %vm463, %v455, %v460
    %v465 = vrsqrt.pop %v434
    %v466 = vmul.f32 %v465, %v434
    %v467 = vmul.f32 %v466, %v465
    %v468 = vmul.f32 0.5, %v467
    %v469 = vsub.f32 1.5, %v468
    %v470 = vmul.f32 %v465, %v469
    %vm471 = vweird.f32 %v434
    %vm472 = vweird.f32 %v465
    %vm473 = vmor %vm471, %vm472
    %v474 = vsel %vm473, %v465, %v470
    %v475 = vmul.f32 %v427, %v444
    %v476 = vmul.f32 %v428, %v454
    %v477 = vmul.f32 %v429, %v464
    %v478 = vmul.f32 %v430, %v474
    %v480 = vperm.slane %v377, 0
    %v482 = vmul.f32 %v475, %v480
    %v483 = vmul.f32 %v476, %v480
    %v484 = vmul.f32 %v477, %v480
    %v485 = vmul.f32 %v478, %v480
    %v487 = vperm.slane %v378, 0
    %v489 = vadd.f32 %v482, %v487
    %v490 = vadd.f32 %v483, %v487
    %v491 = vadd.f32 %v484, %v487
    %v492 = vadd.f32 %v485, %v487
    %v493 = vpack.c.bf16 %v490, %v489
    %v494 = vpack.c.bf16 %v492, %v491
    %v495 = vld [vmem:[%s9] sm:$0xf]
    %v496 = vld [vmem:[%s9 + $0x4] sm:$0xf]
    %v497 = vld [vmem:[%s9 + $0x8] sm:$0xf]
    %v498 = vld [vmem:[%s9 + $0xc] sm:$0xf]
    %v499 = vld [vmem:[%s10] sm:$0x1]
    %v501 = vperm.slane %v499, 0
    %v507 = vunpack.c.l.b16 %v495
    %v508 = vunpack.c.l.b16 %v496
    %v509 = vunpack.c.l.b16 %v497
    %v510 = vunpack.c.l.b16 %v498
    %v511 = vpack.c.b16 %v508, %v507
    %v512 = vpack.c.b16 %v510, %v509
    %v516 = vsel %vm135, %v493, 0
    %v519 = vsel %vm135, %v494, 0
    %521 = vmatpush.bf16.msra.mxu0 0
    %522 = vmatpush.bf16.msra.mxu0 0
    %523 = vmatpush.bf16.msra.mxu0 0
    %524 = vmatpush.bf16.msra.mxu0 0
    %525 = vmatpush.bf16.msra.mxu0 0
    %526 = vmatpush.bf16.msra.mxu0 0
    %527 = vmatpush.bf16.msra.mxu0 %v512
    %528 = vmatpush.bf16.msra.mxu0 %v511
    %529 = vmatmul.bf16.gmra.mxu0 %v516
    %v530 = vpop.f32.mrf.mxu0
    %v531 = vadd.f32 %v501, %v530
    %v532 = vpop.f32.mrf.mxu0
    %v533 = vadd.f32 %v501, %v532
    %534 = vmatmul.bf16.gmra.mxu0 %v519
    %v535 = vpop.f32.mrf.mxu0
    %v536 = vadd.f32 %v501, %v535
    %v537 = vpop.f32.mrf.mxu0
    %v538 = vadd.f32 %v501, %v537
    %539 = vdwg.mxu0
    %v540 = vmul.f32 %v531, 0.5
    %v541 = vmul.f32 %v533, 0.5
    %v542 = vmul.f32 %v536, 0.5
    %v543 = vmul.f32 %v538, 0.5
    %v544 = vmul.f32 %v531, 0.70710677
    %v545 = vmul.f32 %v533, 0.70710677
    %v546 = vmul.f32 %v536, 0.70710677
    %v547 = vmul.f32 %v538, 0.70710677
    %vm548 = vcmp.ge.f32.partialorder %v544, 0.0
    %vm549 = vcmp.ge.f32.partialorder %v545, 0.0
    %vm550 = vcmp.ge.f32.partialorder %v546, 0.0
    %vm551 = vcmp.ge.f32.partialorder %v547, 0.0
    %v552 = vsel %vm548, 1.0, -1.0
    %v553 = vsel %vm549, 1.0, -1.0
    %v554 = vsel %vm550, 1.0, -1.0
    %v555 = vsel %vm551, 1.0, -1.0
    %v556 = vand.u32 2147483647, %v544
    %v557 = vand.u32 2147483647, %v545
    %v558 = vand.u32 2147483647, %v546
    %v559 = vand.u32 2147483647, %v547
    %v560 = vmul.f32 %v556, 0.3275911
    %v561 = vmul.f32 %v557, 0.3275911
    %v562 = vmul.f32 %v558, 0.3275911
    %v563 = vmul.f32 %v559, 0.3275911
    %v564 = vadd.f32 %v560, 1.0
    %v565 = vadd.f32 %v561, 1.0
    %v566 = vadd.f32 %v562, 1.0
    %v567 = vadd.f32 %v563, 1.0
    %v568 = vrcp.pop %v564
    %v569 = vrcp.pop %v565
    %v570 = vrcp.pop %v566
    %v571 = vrcp.pop %v567
    %v572 = vmul.f32 %v564, %v568
    %v573 = vmul.f32 %v565, %v569
    %v574 = vmul.f32 %v566, %v570
    %v575 = vmul.f32 %v567, %v571
    %v576 = vsub.f32 2.0, %v572
    %v577 = vsub.f32 2.0, %v573
    %v578 = vsub.f32 2.0, %v574
    %v579 = vsub.f32 2.0, %v575
    %v580 = vmul.f32 %v568, %v576
    %v581 = vmul.f32 %v569, %v577
    %v582 = vmul.f32 %v570, %v578
    %v583 = vmul.f32 %v571, %v579
    %v584 = vmul.f32 %v580, 1.0614054
    %v585 = vmul.f32 %v581, 1.0614054
    %v586 = vmul.f32 %v582, 1.0614054
    %v587 = vmul.f32 %v583, 1.0614054
    %v588 = vadd.f32 %v584, -1.4531521
    %v589 = vadd.f32 %v585, -1.4531521
    %v590 = vadd.f32 %v586, -1.4531521
    %v591 = vadd.f32 %v587, -1.4531521
    %v592 = vmul.f32 %v588, %v580
    %v593 = vmul.f32 %v589, %v581
    %v594 = vmul.f32 %v590, %v582
    %v595 = vmul.f32 %v591, %v583
    %v596 = vadd.f32 %v592, 1.4214138
    %v597 = vadd.f32 %v593, 1.4214138
    %v598 = vadd.f32 %v594, 1.4214138
    %v599 = vadd.f32 %v595, 1.4214138
    %v600 = vmul.f32 %v596, %v580
    %v601 = vmul.f32 %v597, %v581
    %v602 = vmul.f32 %v598, %v582
    %v603 = vmul.f32 %v599, %v583
    %v604 = vadd.f32 %v600, -0.28449672
    %v605 = vadd.f32 %v601, -0.28449672
    %v606 = vadd.f32 %v602, -0.28449672
    %v607 = vadd.f32 %v603, -0.28449672
    %v608 = vmul.f32 %v604, %v580
    %v609 = vmul.f32 %v605, %v581
    %v610 = vmul.f32 %v606, %v582
    %v611 = vmul.f32 %v607, %v583
    %v612 = vadd.f32 %v608, 0.2548296
    %v613 = vadd.f32 %v609, 0.2548296
    %v614 = vadd.f32 %v610, 0.2548296
    %v615 = vadd.f32 %v611, 0.2548296
    %v616 = vmul.f32 %v612, %v580
    %v617 = vmul.f32 %v613, %v581
    %v618 = vmul.f32 %v614, %v582
    %v619 = vmul.f32 %v615, %v583
    %v620 = vsub.f32 0.0, %v556
    %v621 = vsub.f32 0.0, %v557
    %v622 = vsub.f32 0.0, %v558
    %v623 = vsub.f32 0.0, %v559
    %v624 = vmul.f32 %v620, %v556
    %v625 = vmul.f32 %v621, %v557
    %v626 = vmul.f32 %v622, %v558
    %v627 = vmul.f32 %v623, %v559
    %v628 = vmul.f32 %v624, 1.442695
    %v629 = vpow.pop %v628
    %v630 = vmul.f32 %v625, 1.442695
    %v631 = vpow.pop %v630
    %v632 = vmul.f32 %v626, 1.442695
    %v633 = vpow.pop %v632
    %v634 = vmul.f32 %v627, 1.442695
    %v635 = vpow.pop %v634
    %v636 = vmul.f32 %v616, %v629
    %v637 = vmul.f32 %v617, %v631
    %v638 = vmul.f32 %v618, %v633
    %v639 = vmul.f32 %v619, %v635
    %v640 = vsub.f32 1.0, %v636
    %v641 = vsub.f32 1.0, %v637
    %v642 = vsub.f32 1.0, %v638
    %v643 = vsub.f32 1.0, %v639
    %v644 = vmul.f32 %v552, %v640
    %v645 = vmul.f32 %v553, %v641
    %v646 = vmul.f32 %v554, %v642
    %v647 = vmul.f32 %v555, %v643
    %v648 = vadd.f32 %v644, 1.0
    %v649 = vadd.f32 %v645, 1.0
    %v650 = vadd.f32 %v646, 1.0
    %v651 = vadd.f32 %v647, 1.0
    %v652 = vmul.f32 %v540, %v648
    %v653 = vmul.f32 %v541, %v649
    %v654 = vmul.f32 %v542, %v650
    %v655 = vmul.f32 %v543, %v651
    %v656 = vpack.c.bf16 %v653, %v652
    %v657 = vpack.c.bf16 %v655, %v654
    %v658 = vld [vmem:[%s11] sm:$0xf]
    %v659 = vld [vmem:[%s11 + $0x4] sm:$0xf]
    %v660 = vld [vmem:[%s11 + $0x8] sm:$0xf]
    %v661 = vld [vmem:[%s11 + $0xc] sm:$0xf]
    %v662 = vld [vmem:[%s12] sm:$0x1]
    %v664 = vperm.slane %v662, 0
    %v670 = vunpack.c.l.b16 %v658
    %v671 = vunpack.c.l.b16 %v659
    %v672 = vunpack.c.l.b16 %v660
    %v673 = vunpack.c.l.b16 %v661
    %v674 = vpack.c.b16 %v671, %v670
    %v675 = vpack.c.b16 %v673, %v672
    %v679 = vsel %vm135, %v656, 0
    %v682 = vsel %vm135, %v657, 0
    %684 = vmatpush.bf16.msra.mxu0 0
    %685 = vmatpush.bf16.msra.mxu0 0
    %686 = vmatpush.bf16.msra.mxu0 0
    %687 = vmatpush.bf16.msra.mxu0 0
    %688 = vmatpush.bf16.msra.mxu0 0
    %689 = vmatpush.bf16.msra.mxu0 0
    %690 = vmatpush.bf16.msra.mxu0 %v675
    %691 = vmatpush.bf16.msra.mxu0 %v674
    %692 = vmatmul.bf16.gmra.mxu0 %v679
    %v693 = vpop.f32.mrf.mxu0
    %v694 = vadd.f32 %v664, %v693
    %v695 = vpop.f32.mrf.mxu0
    %v696 = vadd.f32 %v664, %v695
    %697 = vmatmul.bf16.gmra.mxu0 %v682
    %v698 = vpop.f32.mrf.mxu0
    %v699 = vadd.f32 %v664, %v698
    %v700 = vpop.f32.mrf.mxu0
    %v701 = vadd.f32 %v664, %v700
    %702 = vdwg.mxu0
    %v703 = vadd.f32 %v694, %v373
    %v704 = vadd.f32 %v696, %v374
    %v705 = vadd.f32 %v699, %v375
    %v706 = vadd.f32 %v701, %v376
    %s707 = scalar_lea.vmem %s5, 1
    %v708 = vld [vmem:[%s707] sm:$0x1]
    %s709 = scalar_lea.vmem %s6, 1
    %v710 = vld [vmem:[%s709] sm:$0x1]
    %v711 = vsel %vm135, %v703, 0.0
    %712 = vadd.xlane.f32.xlu0 %v711
    %v713 = vpop.xlane.xlu0 %712
    %v714 = vsel %vm135, %v704, 0.0
    %715 = vadd.xlane.f32.xlu0 %v714
    %v716 = vpop.xlane.xlu0 %715
    %v717 = vsel %vm135, %v705, 0.0
    %718 = vadd.xlane.f32.xlu0 %v717
    %v719 = vpop.xlane.xlu0 %718
    %v720 = vsel %vm135, %v706, 0.0
    %721 = vadd.xlane.f32.xlu0 %v720
    %v722 = vpop.xlane.xlu0 %721
    %v723 = vmul.f32 %v713, %v154
    %v724 = vmul.f32 %v716, %v154
    %v725 = vmul.f32 %v719, %v154
    %v726 = vmul.f32 %v722, %v154
    %v727 = vmul.f32 %v703, %v703
    %v728 = vmul.f32 %v704, %v704
    %v729 = vmul.f32 %v705, %v705
    %v730 = vmul.f32 %v706, %v706
    %v731 = vsel %vm135, %v727, 0.0
    %732 = vadd.xlane.f32.xlu0 %v731
    %v733 = vpop.xlane.xlu0 %732
    %v734 = vsel %vm135, %v728, 0.0
    %735 = vadd.xlane.f32.xlu0 %v734
    %v736 = vpop.xlane.xlu0 %735
    %v737 = vsel %vm135, %v729, 0.0
    %738 = vadd.xlane.f32.xlu0 %v737
    %v739 = vpop.xlane.xlu0 %738
    %v740 = vsel %vm135, %v730, 0.0
    %741 = vadd.xlane.f32.xlu0 %v740
    %v742 = vpop.xlane.xlu0 %741
    %v743 = vmul.f32 %v733, %v154
    %v744 = vmul.f32 %v736, %v154
    %v745 = vmul.f32 %v739, %v154
    %v746 = vmul.f32 %v742, %v154
    %v747 = vmul.f32 %v723, %v723
    %v748 = vmul.f32 %v724, %v724
    %v749 = vmul.f32 %v725, %v725
    %v750 = vmul.f32 %v726, %v726
    %v751 = vsub.f32 %v743, %v747
    %v752 = vsub.f32 %v744, %v748
    %v753 = vsub.f32 %v745, %v749
    %v754 = vsub.f32 %v746, %v750
    %v755 = vmax.f32 %v751, 0.0
    %v756 = vmax.f32 %v752, 0.0
    %v757 = vmax.f32 %v753, 0.0
    %v758 = vmax.f32 %v754, 0.0
    %v759 = vsub.f32 %v703, %v723
    %v760 = vsub.f32 %v704, %v724
    %v761 = vsub.f32 %v705, %v725
    %v762 = vsub.f32 %v706, %v726
    %v763 = vadd.f32 %v755, 1e-05
    %v764 = vadd.f32 %v756, 1e-05
    %v765 = vadd.f32 %v757, 1e-05
    %v766 = vadd.f32 %v758, 1e-05
    %v767 = vrsqrt.pop %v763
    %v768 = vmul.f32 %v767, %v763
    %v769 = vmul.f32 %v768, %v767
    %v770 = vmul.f32 0.5, %v769
    %v771 = vsub.f32 1.5, %v770
    %v772 = vmul.f32 %v767, %v771
    %vm773 = vweird.f32 %v763
    %vm774 = vweird.f32 %v767
    %vm775 = vmor %vm773, %vm774
    %v776 = vsel %vm775, %v767, %v772
    %v777 = vrsqrt.pop %v764
    %v778 = vmul.f32 %v777, %v764
    %v779 = vmul.f32 %v778, %v777
    %v780 = vmul.f32 0.5, %v779
    %v781 = vsub.f32 1.5, %v780
    %v782 = vmul.f32 %v777, %v781
    %vm783 = vweird.f32 %v764
    %vm784 = vweird.f32 %v777
    %vm785 = vmor %vm783, %vm784
    %v786 = vsel %vm785, %v777, %v782
    %v787 = vrsqrt.pop %v765
    %v788 = vmul.f32 %v787, %v765
    %v789 = vmul.f32 %v788, %v787
    %v790 = vmul.f32 0.5, %v789
    %v791 = vsub.f32 1.5, %v790
    %v792 = vmul.f32 %v787, %v791
    %vm793 = vweird.f32 %v765
    %vm794 = vweird.f32 %v787
    %vm795 = vmor %vm793, %vm794
    %v796 = vsel %vm795, %v787, %v792
    %v797 = vrsqrt.pop %v766
    %v798 = vmul.f32 %v797, %v766
    %v799 = vmul.f32 %v798, %v797
    %v800 = vmul.f32 0.5, %v799
    %v801 = vsub.f32 1.5, %v800
    %v802 = vmul.f32 %v797, %v801
    %vm803 = vweird.f32 %v766
    %vm804 = vweird.f32 %v797
    %vm805 = vmor %vm803, %vm804
    %v806 = vsel %vm805, %v797, %v802
    %v807 = vmul.f32 %v759, %v776
    %v808 = vmul.f32 %v760, %v786
    %v809 = vmul.f32 %v761, %v796
    %v810 = vmul.f32 %v762, %v806
    %v812 = vperm.slane %v708, 0
    %v814 = vmul.f32 %v807, %v812
    %v815 = vmul.f32 %v808, %v812
    %v816 = vmul.f32 %v809, %v812
    %v817 = vmul.f32 %v810, %v812
    %v819 = vperm.slane %v710, 0
    %v821 = vadd.f32 %v814, %v819
    %v822 = vadd.f32 %v815, %v819
    %v823 = vadd.f32 %v816, %v819
    %v824 = vadd.f32 %v817, %v819
    %v825 = vadd.f32 %v821, %v703
    %v826 = vadd.f32 %v822, %v704
    %v827 = vadd.f32 %v823, %v705
    %v828 = vadd.f32 %v824, %v706
    %s829 = scalar_lea.vmem %s7, 1
    %v830 = vld [vmem:[%s829] sm:$0x1]
    %s831 = scalar_lea.vmem %s8, 1
    %v832 = vld [vmem:[%s831] sm:$0x1]
    %v833 = vsel %vm135, %v825, 0.0
    %834 = vadd.xlane.f32.xlu0 %v833
    %v835 = vpop.xlane.xlu0 %834
    %v836 = vsel %vm135, %v826, 0.0
    %837 = vadd.xlane.f32.xlu0 %v836
    %v838 = vpop.xlane.xlu0 %837
    %v839 = vsel %vm135, %v827, 0.0
    %840 = vadd.xlane.f32.xlu0 %v839
    %v841 = vpop.xlane.xlu0 %840
    %v842 = vsel %vm135, %v828, 0.0
    %843 = vadd.xlane.f32.xlu0 %v842
    %v844 = vpop.xlane.xlu0 %843
    %v845 = vmul.f32 %v835, %v154
    %v846 = vmul.f32 %v838, %v154
    %v847 = vmul.f32 %v841, %v154
    %v848 = vmul.f32 %v844, %v154
    %v849 = vmul.f32 %v825, %v825
    %v850 = vmul.f32 %v826, %v826
    %v851 = vmul.f32 %v827, %v827
    %v852 = vmul.f32 %v828, %v828
    %v853 = vsel %vm135, %v849, 0.0
    %854 = vadd.xlane.f32.xlu0 %v853
    %v855 = vpop.xlane.xlu0 %854
    %v856 = vsel %vm135, %v850, 0.0
    %857 = vadd.xlane.f32.xlu0 %v856
    %v858 = vpop.xlane.xlu0 %857
    %v859 = vsel %vm135, %v851, 0.0
    %860 = vadd.xlane.f32.xlu0 %v859
    %v861 = vpop.xlane.xlu0 %860
    %v862 = vsel %vm135, %v852, 0.0
    %863 = vadd.xlane.f32.xlu0 %v862
    %v864 = vpop.xlane.xlu0 %863
    %v865 = vmul.f32 %v855, %v154
    %v866 = vmul.f32 %v858, %v154
    %v867 = vmul.f32 %v861, %v154
    %v868 = vmul.f32 %v864, %v154
    %v869 = vmul.f32 %v845, %v845
    %v870 = vmul.f32 %v846, %v846
    %v871 = vmul.f32 %v847, %v847
    %v872 = vmul.f32 %v848, %v848
    %v873 = vsub.f32 %v865, %v869
    %v874 = vsub.f32 %v866, %v870
    %v875 = vsub.f32 %v867, %v871
    %v876 = vsub.f32 %v868, %v872
    %v877 = vmax.f32 %v873, 0.0
    %v878 = vmax.f32 %v874, 0.0
    %v879 = vmax.f32 %v875, 0.0
    %v880 = vmax.f32 %v876, 0.0
    %v881 = vsub.f32 %v825, %v845
    %v882 = vsub.f32 %v826, %v846
    %v883 = vsub.f32 %v827, %v847
    %v884 = vsub.f32 %v828, %v848
    %v885 = vadd.f32 %v877, 1e-05
    %v886 = vadd.f32 %v878, 1e-05
    %v887 = vadd.f32 %v879, 1e-05
    %v888 = vadd.f32 %v880, 1e-05
    %v889 = vrsqrt.pop %v885
    %v890 = vmul.f32 %v889, %v885
    %v891 = vmul.f32 %v890, %v889
    %v892 = vmul.f32 0.5, %v891
    %v893 = vsub.f32 1.5, %v892
    %v894 = vmul.f32 %v889, %v893
    %vm895 = vweird.f32 %v885
    %vm896 = vweird.f32 %v889
    %vm897 = vmor %vm895, %vm896
    %v898 = vsel %vm897, %v889, %v894
    %v899 = vrsqrt.pop %v886
    %v900 = vmul.f32 %v899, %v886
    %v901 = vmul.f32 %v900, %v899
    %v902 = vmul.f32 0.5, %v901
    %v903 = vsub.f32 1.5, %v902
    %v904 = vmul.f32 %v899, %v903
    %vm905 = vweird.f32 %v886
    %vm906 = vweird.f32 %v899
    %vm907 = vmor %vm905, %vm906
    %v908 = vsel %vm907, %v899, %v904
    %v909 = vrsqrt.pop %v887
    %v910 = vmul.f32 %v909, %v887
    %v911 = vmul.f32 %v910, %v909
    %v912 = vmul.f32 0.5, %v911
    %v913 = vsub.f32 1.5, %v912
    %v914 = vmul.f32 %v909, %v913
    %vm915 = vweird.f32 %v887
    %vm916 = vweird.f32 %v909
    %vm917 = vmor %vm915, %vm916
    %v918 = vsel %vm917, %v909, %v914
    %v919 = vrsqrt.pop %v888
    %v920 = vmul.f32 %v919, %v888
    %v921 = vmul.f32 %v920, %v919
    %v922 = vmul.f32 0.5, %v921
    %v923 = vsub.f32 1.5, %v922
    %v924 = vmul.f32 %v919, %v923
    %vm925 = vweird.f32 %v888
    %vm926 = vweird.f32 %v919
    %vm927 = vmor %vm925, %vm926
    %v928 = vsel %vm927, %v919, %v924
    %v929 = vmul.f32 %v881, %v898
    %v930 = vmul.f32 %v882, %v908
    %v931 = vmul.f32 %v883, %v918
    %v932 = vmul.f32 %v884, %v928
    %v934 = vperm.slane %v830, 0
    %v936 = vmul.f32 %v929, %v934
    %v937 = vmul.f32 %v930, %v934
    %v938 = vmul.f32 %v931, %v934
    %v939 = vmul.f32 %v932, %v934
    %v941 = vperm.slane %v832, 0
    %v943 = vadd.f32 %v936, %v941
    %v944 = vadd.f32 %v937, %v941
    %v945 = vadd.f32 %v938, %v941
    %v946 = vadd.f32 %v939, %v941
    %v947 = vpack.c.bf16 %v944, %v943
    %v948 = vpack.c.bf16 %v946, %v945
    %s949 = scalar_lea.vmem %s9, 16
    %v950 = vld [vmem:[%s949] sm:$0xf]
    %v951 = vld [vmem:[%s949 + $0x4] sm:$0xf]
    %v952 = vld [vmem:[%s949 + $0x8] sm:$0xf]
    %v953 = vld [vmem:[%s949 + $0xc] sm:$0xf]
    %s954 = scalar_lea.vmem %s10, 1
    %v955 = vld [vmem:[%s954] sm:$0x1]
    %v957 = vperm.slane %v955, 0
    %v963 = vunpack.c.l.b16 %v950
    %v964 = vunpack.c.l.b16 %v951
    %v965 = vunpack.c.l.b16 %v952
    %v966 = vunpack.c.l.b16 %v953
    %v967 = vpack.c.b16 %v964, %v963
    %v968 = vpack.c.b16 %v966, %v965
    %v972 = vsel %vm135, %v947, 0
    %v975 = vsel %vm135, %v948, 0
    %977 = vmatpush.bf16.msra.mxu0 0
    %978 = vmatpush.bf16.msra.mxu0 0
    %979 = vmatpush.bf16.msra.mxu0 0
    %980 = vmatpush.bf16.msra.mxu0 0
    %981 = vmatpush.bf16.msra.mxu0 0
    %982 = vmatpush.bf16.msra.mxu0 0
    %983 = vmatpush.bf16.msra.mxu0 %v968
    %984 = vmatpush.bf16.msra.mxu0 %v967
    %985 = vmatmul.bf16.gmra.mxu0 %v972
    %v986 = vpop.f32.mrf.mxu0
    %v987 = vadd.f32 %v957, %v986
    %v988 = vpop.f32.mrf.mxu0
    %v989 = vadd.f32 %v957, %v988
    %990 = vmatmul.bf16.gmra.mxu0 %v975
    %v991 = vpop.f32.mrf.mxu0
    %v992 = vadd.f32 %v957, %v991
    %v993 = vpop.f32.mrf.mxu0
    %v994 = vadd.f32 %v957, %v993
    %995 = vdwg.mxu0
    %v996 = vmul.f32 %v987, 0.5
    %v997 = vmul.f32 %v989, 0.5
    %v998 = vmul.f32 %v992, 0.5
    %v999 = vmul.f32 %v994, 0.5
    %v1000 = vmul.f32 %v987, 0.70710677
    %v1001 = vmul.f32 %v989, 0.70710677
    %v1002 = vmul.f32 %v992, 0.70710677
    %v1003 = vmul.f32 %v994, 0.70710677
    %vm1004 = vcmp.ge.f32.partialorder %v1000, 0.0
    %vm1005 = vcmp.ge.f32.partialorder %v1001, 0.0
    %vm1006 = vcmp.ge.f32.partialorder %v1002, 0.0
    %vm1007 = vcmp.ge.f32.partialorder %v1003, 0.0
    %v1008 = vsel %vm1004, 1.0, -1.0
    %v1009 = vsel %vm1005, 1.0, -1.0
    %v1010 = vsel %vm1006, 1.0, -1.0
    %v1011 = vsel %vm1007, 1.0, -1.0
    %v1012 = vand.u32 2147483647, %v1000
    %v1013 = vand.u32 2147483647, %v1001
    %v1014 = vand.u32 2147483647, %v1002
    %v1015 = vand.u32 2147483647, %v1003
    %v1016 = vmul.f32 %v1012, 0.3275911
    %v1017 = vmul.f32 %v1013, 0.3275911
    %v1018 = vmul.f32 %v1014, 0.3275911
    %v1019 = vmul.f32 %v1015, 0.3275911
    %v1020 = vadd.f32 %v1016, 1.0
    %v1021 = vadd.f32 %v1017, 1.0
    %v1022 = vadd.f32 %v1018, 1.0
    %v1023 = vadd.f32 %v1019, 1.0
    %v1024 = vrcp.pop %v1020
    %v1025 = vrcp.pop %v1021
    %v1026 = vrcp.pop %v1022
    %v1027 = vrcp.pop %v1023
    %v1028 = vmul.f32 %v1020, %v1024
    %v1029 = vmul.f32 %v1021, %v1025
    %v1030 = vmul.f32 %v1022, %v1026
    %v1031 = vmul.f32 %v1023, %v1027
    %v1032 = vsub.f32 2.0, %v1028
    %v1033 = vsub.f32 2.0, %v1029
    %v1034 = vsub.f32 2.0, %v1030
    %v1035 = vsub.f32 2.0, %v1031
    %v1036 = vmul.f32 %v1024, %v1032
    %v1037 = vmul.f32 %v1025, %v1033
    %v1038 = vmul.f32 %v1026, %v1034
    %v1039 = vmul.f32 %v1027, %v1035
    %v1040 = vmul.f32 %v1036, 1.0614054
    %v1041 = vmul.f32 %v1037, 1.0614054
    %v1042 = vmul.f32 %v1038, 1.0614054
    %v1043 = vmul.f32 %v1039, 1.0614054
    %v1044 = vadd.f32 %v1040, -1.4531521
    %v1045 = vadd.f32 %v1041, -1.4531521
    %v1046 = vadd.f32 %v1042, -1.4531521
    %v1047 = vadd.f32 %v1043, -1.4531521
    %v1048 = vmul.f32 %v1044, %v1036
    %v1049 = vmul.f32 %v1045, %v1037
    %v1050 = vmul.f32 %v1046, %v1038
    %v1051 = vmul.f32 %v1047, %v1039
    %v1052 = vadd.f32 %v1048, 1.4214138
    %v1053 = vadd.f32 %v1049, 1.4214138
    %v1054 = vadd.f32 %v1050, 1.4214138
    %v1055 = vadd.f32 %v1051, 1.4214138
    %v1056 = vmul.f32 %v1052, %v1036
    %v1057 = vmul.f32 %v1053, %v1037
    %v1058 = vmul.f32 %v1054, %v1038
    %v1059 = vmul.f32 %v1055, %v1039
    %v1060 = vadd.f32 %v1056, -0.28449672
    %v1061 = vadd.f32 %v1057, -0.28449672
    %v1062 = vadd.f32 %v1058, -0.28449672
    %v1063 = vadd.f32 %v1059, -0.28449672
    %v1064 = vmul.f32 %v1060, %v1036
    %v1065 = vmul.f32 %v1061, %v1037
    %v1066 = vmul.f32 %v1062, %v1038
    %v1067 = vmul.f32 %v1063, %v1039
    %v1068 = vadd.f32 %v1064, 0.2548296
    %v1069 = vadd.f32 %v1065, 0.2548296
    %v1070 = vadd.f32 %v1066, 0.2548296
    %v1071 = vadd.f32 %v1067, 0.2548296
    %v1072 = vmul.f32 %v1068, %v1036
    %v1073 = vmul.f32 %v1069, %v1037
    %v1074 = vmul.f32 %v1070, %v1038
    %v1075 = vmul.f32 %v1071, %v1039
    %v1076 = vsub.f32 0.0, %v1012
    %v1077 = vsub.f32 0.0, %v1013
    %v1078 = vsub.f32 0.0, %v1014
    %v1079 = vsub.f32 0.0, %v1015
    %v1080 = vmul.f32 %v1076, %v1012
    %v1081 = vmul.f32 %v1077, %v1013
    %v1082 = vmul.f32 %v1078, %v1014
    %v1083 = vmul.f32 %v1079, %v1015
    %v1084 = vmul.f32 %v1080, 1.442695
    %v1085 = vpow.pop %v1084
    %v1086 = vmul.f32 %v1081, 1.442695
    %v1087 = vpow.pop %v1086
    %v1088 = vmul.f32 %v1082, 1.442695
    %v1089 = vpow.pop %v1088
    %v1090 = vmul.f32 %v1083, 1.442695
    %v1091 = vpow.pop %v1090
    %v1092 = vmul.f32 %v1072, %v1085
    %v1093 = vmul.f32 %v1073, %v1087
    %v1094 = vmul.f32 %v1074, %v1089
    %v1095 = vmul.f32 %v1075, %v1091
    %v1096 = vsub.f32 1.0, %v1092
    %v1097 = vsub.f32 1.0, %v1093
    %v1098 = vsub.f32 1.0, %v1094
    %v1099 = vsub.f32 1.0, %v1095
    %v1100 = vmul.f32 %v1008, %v1096
    %v1101 = vmul.f32 %v1009, %v1097
    %v1102 = vmul.f32 %v1010, %v1098
    %v1103 = vmul.f32 %v1011, %v1099
    %v1104 = vadd.f32 %v1100, 1.0
    %v1105 = vadd.f32 %v1101, 1.0
    %v1106 = vadd.f32 %v1102, 1.0
    %v1107 = vadd.f32 %v1103, 1.0
    %v1108 = vmul.f32 %v996, %v1104
    %v1109 = vmul.f32 %v997, %v1105
    %v1110 = vmul.f32 %v998, %v1106
    %v1111 = vmul.f32 %v999, %v1107
    %v1112 = vpack.c.bf16 %v1109, %v1108
    %v1113 = vpack.c.bf16 %v1111, %v1110
    %s1114 = scalar_lea.vmem %s11, 16
    %v1115 = vld [vmem:[%s1114] sm:$0xf]
    %v1116 = vld [vmem:[%s1114 + $0x4] sm:$0xf]
    %v1117 = vld [vmem:[%s1114 + $0x8] sm:$0xf]
    %v1118 = vld [vmem:[%s1114 + $0xc] sm:$0xf]
    %s1119 = scalar_lea.vmem %s12, 1
    %v1120 = vld [vmem:[%s1119] sm:$0x1]
    %v1122 = vperm.slane %v1120, 0
    %v1128 = vunpack.c.l.b16 %v1115
    %v1129 = vunpack.c.l.b16 %v1116
    %v1130 = vunpack.c.l.b16 %v1117
    %v1131 = vunpack.c.l.b16 %v1118
    %v1132 = vpack.c.b16 %v1129, %v1128
    %v1133 = vpack.c.b16 %v1131, %v1130
    %v1137 = vsel %vm135, %v1112, 0
    %v1140 = vsel %vm135, %v1113, 0
    %1142 = vmatpush.bf16.msra.mxu0 0
    %1143 = vmatpush.bf16.msra.mxu0 0
    %1144 = vmatpush.bf16.msra.mxu0 0
    %1145 = vmatpush.bf16.msra.mxu0 0
    %1146 = vmatpush.bf16.msra.mxu0 0
    %1147 = vmatpush.bf16.msra.mxu0 0
    %1148 = vmatpush.bf16.msra.mxu0 %v1133
    %1149 = vmatpush.bf16.msra.mxu0 %v1132
    %1150 = vmatmul.bf16.gmra.mxu0 %v1137
    %v1151 = vpop.f32.mrf.mxu0
    %v1152 = vadd.f32 %v1122, %v1151
    %v1153 = vpop.f32.mrf.mxu0
    %v1154 = vadd.f32 %v1122, %v1153
    %1155 = vmatmul.bf16.gmra.mxu0 %v1140
    %v1156 = vpop.f32.mrf.mxu0
    %v1157 = vadd.f32 %v1122, %v1156
    %v1158 = vpop.f32.mrf.mxu0
    %v1159 = vadd.f32 %v1122, %v1158
    %1160 = vdwg.mxu0
    %v1161 = vadd.f32 %v1152, %v825
    %v1162 = vadd.f32 %v1154, %v826
    %v1163 = vadd.f32 %v1157, %v827
    %v1164 = vadd.f32 %v1159, %v828
    %1166 = vrot.lane.b32.xlu0 %v1162, 32
    %v1167 = vpop.permute.xlu0 %1166
    %v1169 = vsel %vm135, %v1161, %v1167
    %1171 = vrot.lane.b32.xlu0 %v1164, 32
    %v1172 = vpop.permute.xlu0 %1171
    %v1174 = vsel %vm135, %v1163, %v1172
    %v1175 = vld [vmem:[%s13] sm:$0x1]
    %v1176 = vld [vmem:[%s14] sm:$0x1]
    %v1177 = vsel %vm101, %v1169, 0.0
    %1178 = vadd.xlane.f32.xlu0 %v1177
    %v1179 = vpop.xlane.xlu0 %1178
    %v1180 = vsel %vm101, %v1174, 0.0
    %1181 = vadd.xlane.f32.xlu0 %v1180
    %v1182 = vpop.xlane.xlu0 %1181
    %v1183 = vrcp.pop 64.0
    %v1184 = vmul.f32 64.0, %v1183
    %v1185 = vsub.f32 1.0, %v1184
    %v1186 = vmul.f32 %v1183, %v1185
    %v1187 = vadd.f32 %v1183, %v1186
    %vm1188 = vweird.f32 %v1183
    %v1189 = vsel %vm1188, %v1183, %v1187
    %v1190 = vmul.f32 %v1179, %v1189
    %v1191 = vmul.f32 %v1182, %v1189
    %v1192 = vmul.f32 %v1169, %v1169
    %v1193 = vmul.f32 %v1174, %v1174
    %v1194 = vsel %vm101, %v1192, 0.0
    %1195 = vadd.xlane.f32.xlu0 %v1194
    %v1196 = vpop.xlane.xlu0 %1195
    %v1197 = vsel %vm101, %v1193, 0.0
    %1198 = vadd.xlane.f32.xlu0 %v1197
    %v1199 = vpop.xlane.xlu0 %1198
    %v1200 = vmul.f32 %v1196, %v1189
    %v1201 = vmul.f32 %v1199, %v1189
    %v1202 = vmul.f32 %v1190, %v1190
    %v1203 = vmul.f32 %v1191, %v1191
    %v1204 = vsub.f32 %v1200, %v1202
    %v1205 = vsub.f32 %v1201, %v1203
    %v1206 = vmax.f32 %v1204, 0.0
    %v1207 = vmax.f32 %v1205, 0.0
    %v1208 = vsub.f32 %v1169, %v1190
    %v1209 = vsub.f32 %v1174, %v1191
    %v1210 = vadd.f32 %v1206, 1e-05
    %v1211 = vadd.f32 %v1207, 1e-05
    %v1212 = vrsqrt.pop %v1210
    %v1213 = vmul.f32 %v1212, %v1210
    %v1214 = vmul.f32 %v1213, %v1212
    %v1215 = vmul.f32 0.5, %v1214
    %v1216 = vsub.f32 1.5, %v1215
    %v1217 = vmul.f32 %v1212, %v1216
    %vm1218 = vweird.f32 %v1210
    %vm1219 = vweird.f32 %v1212
    %vm1220 = vmor %vm1218, %vm1219
    %v1221 = vsel %vm1220, %v1212, %v1217
    %v1222 = vrsqrt.pop %v1211
    %v1223 = vmul.f32 %v1222, %v1211
    %v1224 = vmul.f32 %v1223, %v1222
    %v1225 = vmul.f32 0.5, %v1224
    %v1226 = vsub.f32 1.5, %v1225
    %v1227 = vmul.f32 %v1222, %v1226
    %vm1228 = vweird.f32 %v1211
    %vm1229 = vweird.f32 %v1222
    %vm1230 = vmor %vm1228, %vm1229
    %v1231 = vsel %vm1230, %v1222, %v1227
    %v1232 = vmul.f32 %v1208, %v1221
    %v1233 = vmul.f32 %v1209, %v1231
    %v1235 = vperm.slane %v1175, 0
    %v1237 = vmul.f32 %v1232, %v1235
    %v1238 = vmul.f32 %v1233, %v1235
    %v1240 = vperm.slane %v1176, 0
    %v1242 = vadd.f32 %v1237, %v1240
    %v1243 = vadd.f32 %v1238, %v1240
    %v1244 = vpack.c.bf16 %v1243, %v1242
    %v1245 = vld [vmem:[%s15] sm:$0xf]
    %v1246 = vld [vmem:[%s15 + $0x4] sm:$0xf]
    %v1247 = vld [vmem:[%s15 + $0x8] sm:$0xf]
    %v1248 = vld [vmem:[%s15 + $0xc] sm:$0xf]
    %v1249 = vld [vmem:[%s15 + $0x10] sm:$0xf]
    %v1250 = vld [vmem:[%s15 + $0x14] sm:$0xf]
    %v1251 = vld [vmem:[%s15 + $0x18] sm:$0xf]
    %v1252 = vld [vmem:[%s15 + $0x1c] sm:$0xf]
    %v1261 = vunpack.c.l.b16 %v1245
    %v1262 = vunpack.c.l.b16 %v1246
    %v1263 = vunpack.c.l.b16 %v1247
    %v1264 = vunpack.c.l.b16 %v1248
    %v1265 = vunpack.c.l.b16 %v1249
    %v1266 = vunpack.c.l.b16 %v1250
    %v1267 = vunpack.c.l.b16 %v1251
    %v1268 = vunpack.c.l.b16 %v1252
    %v1269 = vpack.c.b16 %v1262, %v1261
    %v1270 = vpack.c.b16 %v1264, %v1263
    %v1271 = vpack.c.b16 %v1266, %v1265
    %v1272 = vpack.c.b16 %v1268, %v1267
    %v1278 = vsel %vm101, %v1244, 0
    %1280 = vmatpush.bf16.msra.mxu0 0
    %1281 = vmatpush.bf16.msra.mxu0 0
    %1282 = vmatpush.bf16.msra.mxu0 0
    %1283 = vmatpush.bf16.msra.mxu0 0
    %1284 = vmatpush.bf16.msra.mxu0 %v1272
    %1285 = vmatpush.bf16.msra.mxu0 %v1271
    %1286 = vmatpush.bf16.msra.mxu0 %v1270
    %1287 = vmatpush.bf16.msra.mxu0 %v1269
    %1288 = vmatmul.bf16.gmra.mxu0 %v1278
    %v1289 = vpop.f32.mrf.mxu0
    %v1290 = vadd.f32 0.0, %v1289
    %v1291 = vpop.f32.mrf.mxu0
    %v1292 = vadd.f32 0.0, %v1291
    %1293 = vdwg.mxu0
    %s1294 = scalar_lea.vmem %s5, 2
    %v1295 = vld [vmem:[%s1294] sm:$0x1]
    %s1296 = scalar_lea.vmem %s6, 2
    %v1297 = vld [vmem:[%s1296] sm:$0x1]
    %v1298 = vsel %vm135, %v1290, 0.0
    %1299 = vadd.xlane.f32.xlu0 %v1298
    %v1300 = vpop.xlane.xlu0 %1299
    %v1301 = vsel %vm135, %v1292, 0.0
    %1302 = vadd.xlane.f32.xlu0 %v1301
    %v1303 = vpop.xlane.xlu0 %1302
    %v1304 = vmul.f32 %v1300, %v154
    %v1305 = vmul.f32 %v1303, %v154
    %v1306 = vmul.f32 %v1290, %v1290
    %v1307 = vmul.f32 %v1292, %v1292
    %v1308 = vsel %vm135, %v1306, 0.0
    %1309 = vadd.xlane.f32.xlu0 %v1308
    %v1310 = vpop.xlane.xlu0 %1309
    %v1311 = vsel %vm135, %v1307, 0.0
    %1312 = vadd.xlane.f32.xlu0 %v1311
    %v1313 = vpop.xlane.xlu0 %1312
    %v1314 = vmul.f32 %v1310, %v154
    %v1315 = vmul.f32 %v1313, %v154
    %v1316 = vmul.f32 %v1304, %v1304
    %v1317 = vmul.f32 %v1305, %v1305
    %v1318 = vsub.f32 %v1314, %v1316
    %v1319 = vsub.f32 %v1315, %v1317
    %v1320 = vmax.f32 %v1318, 0.0
    %v1321 = vmax.f32 %v1319, 0.0
    %v1322 = vsub.f32 %v1290, %v1304
    %v1323 = vsub.f32 %v1292, %v1305
    %v1324 = vadd.f32 %v1320, 1e-05
    %v1325 = vadd.f32 %v1321, 1e-05
    %v1326 = vrsqrt.pop %v1324
    %v1327 = vmul.f32 %v1326, %v1324
    %v1328 = vmul.f32 %v1327, %v1326
    %v1329 = vmul.f32 0.5, %v1328
    %v1330 = vsub.f32 1.5, %v1329
    %v1331 = vmul.f32 %v1326, %v1330
    %vm1332 = vweird.f32 %v1324
    %vm1333 = vweird.f32 %v1326
    %vm1334 = vmor %vm1332, %vm1333
    %v1335 = vsel %vm1334, %v1326, %v1331
    %v1336 = vrsqrt.pop %v1325
    %v1337 = vmul.f32 %v1336, %v1325
    %v1338 = vmul.f32 %v1337, %v1336
    %v1339 = vmul.f32 0.5, %v1338
    %v1340 = vsub.f32 1.5, %v1339
    %v1341 = vmul.f32 %v1336, %v1340
    %vm1342 = vweird.f32 %v1325
    %vm1343 = vweird.f32 %v1336
    %vm1344 = vmor %vm1342, %vm1343
    %v1345 = vsel %vm1344, %v1336, %v1341
    %v1346 = vmul.f32 %v1322, %v1335
    %v1347 = vmul.f32 %v1323, %v1345
    %v1349 = vperm.slane %v1295, 0
    %v1351 = vmul.f32 %v1346, %v1349
    %v1352 = vmul.f32 %v1347, %v1349
    %v1354 = vperm.slane %v1297, 0
    %v1356 = vadd.f32 %v1351, %v1354
    %v1357 = vadd.f32 %v1352, %v1354
    %v1358 = vadd.f32 %v1356, %v1290
    %v1359 = vadd.f32 %v1357, %v1292
    %s1360 = scalar_lea.vmem %s7, 2
    %v1361 = vld [vmem:[%s1360] sm:$0x1]
    %s1362 = scalar_lea.vmem %s8, 2
    %v1363 = vld [vmem:[%s1362] sm:$0x1]
    %v1364 = vsel %vm135, %v1358, 0.0
    %1365 = vadd.xlane.f32.xlu0 %v1364
    %v1366 = vpop.xlane.xlu0 %1365
    %v1367 = vsel %vm135, %v1359, 0.0
    %1368 = vadd.xlane.f32.xlu0 %v1367
    %v1369 = vpop.xlane.xlu0 %1368
    %v1370 = vmul.f32 %v1366, %v154
    %v1371 = vmul.f32 %v1369, %v154
    %v1372 = vmul.f32 %v1358, %v1358
    %v1373 = vmul.f32 %v1359, %v1359
    %v1374 = vsel %vm135, %v1372, 0.0
    %1375 = vadd.xlane.f32.xlu0 %v1374
    %v1376 = vpop.xlane.xlu0 %1375
    %v1377 = vsel %vm135, %v1373, 0.0
    %1378 = vadd.xlane.f32.xlu0 %v1377
    %v1379 = vpop.xlane.xlu0 %1378
    %v1380 = vmul.f32 %v1376, %v154
    %v1381 = vmul.f32 %v1379, %v154
    %v1382 = vmul.f32 %v1370, %v1370
    %v1383 = vmul.f32 %v1371, %v1371
    %v1384 = vsub.f32 %v1380, %v1382
    %v1385 = vsub.f32 %v1381, %v1383
    %v1386 = vmax.f32 %v1384, 0.0
    %v1387 = vmax.f32 %v1385, 0.0
    %v1388 = vsub.f32 %v1358, %v1370
    %v1389 = vsub.f32 %v1359, %v1371
    %v1390 = vadd.f32 %v1386, 1e-05
    %v1391 = vadd.f32 %v1387, 1e-05
    %v1392 = vrsqrt.pop %v1390
    %v1393 = vmul.f32 %v1392, %v1390
    %v1394 = vmul.f32 %v1393, %v1392
    %v1395 = vmul.f32 0.5, %v1394
    %v1396 = vsub.f32 1.5, %v1395
    %v1397 = vmul.f32 %v1392, %v1396
    %vm1398 = vweird.f32 %v1390
    %vm1399 = vweird.f32 %v1392
    %vm1400 = vmor %vm1398, %vm1399
    %v1401 = vsel %vm1400, %v1392, %v1397
    %v1402 = vrsqrt.pop %v1391
    %v1403 = vmul.f32 %v1402, %v1391
    %v1404 = vmul.f32 %v1403, %v1402
    %v1405 = vmul.f32 0.5, %v1404
    %v1406 = vsub.f32 1.5, %v1405
    %v1407 = vmul.f32 %v1402, %v1406
    %vm1408 = vweird.f32 %v1391
    %vm1409 = vweird.f32 %v1402
    %vm1410 = vmor %vm1408, %vm1409
    %v1411 = vsel %vm1410, %v1402, %v1407
    %v1412 = vmul.f32 %v1388, %v1401
    %v1413 = vmul.f32 %v1389, %v1411
    %v1415 = vperm.slane %v1361, 0
    %v1417 = vmul.f32 %v1412, %v1415
    %v1418 = vmul.f32 %v1413, %v1415
    %v1420 = vperm.slane %v1363, 0
    %v1422 = vadd.f32 %v1417, %v1420
    %v1423 = vadd.f32 %v1418, %v1420
    %v1424 = vpack.c.bf16 %v1423, %v1422
    %s1425 = scalar_lea.vmem %s9, 32
    %v1426 = vld [vmem:[%s1425] sm:$0xf]
    %v1427 = vld [vmem:[%s1425 + $0x4] sm:$0xf]
    %v1428 = vld [vmem:[%s1425 + $0x8] sm:$0xf]
    %v1429 = vld [vmem:[%s1425 + $0xc] sm:$0xf]
    %s1430 = scalar_lea.vmem %s10, 2
    %v1431 = vld [vmem:[%s1430] sm:$0x1]
    %v1433 = vperm.slane %v1431, 0
    %v1439 = vunpack.c.l.b16 %v1426
    %v1440 = vunpack.c.l.b16 %v1427
    %v1441 = vunpack.c.l.b16 %v1428
    %v1442 = vunpack.c.l.b16 %v1429
    %v1443 = vpack.c.b16 %v1440, %v1439
    %v1444 = vpack.c.b16 %v1442, %v1441
    %v1448 = vsel %vm135, %v1424, 0
    %1450 = vmatpush.bf16.msra.mxu0 0
    %1451 = vmatpush.bf16.msra.mxu0 0
    %1452 = vmatpush.bf16.msra.mxu0 0
    %1453 = vmatpush.bf16.msra.mxu0 0
    %1454 = vmatpush.bf16.msra.mxu0 0
    %1455 = vmatpush.bf16.msra.mxu0 0
    %1456 = vmatpush.bf16.msra.mxu0 %v1444
    %1457 = vmatpush.bf16.msra.mxu0 %v1443
    %1458 = vmatmul.bf16.gmra.mxu0 %v1448
    %v1459 = vpop.f32.mrf.mxu0
    %v1460 = vadd.f32 %v1433, %v1459
    %v1461 = vpop.f32.mrf.mxu0
    %v1462 = vadd.f32 %v1433, %v1461
    %1463 = vdwg.mxu0
    %v1464 = vmul.f32 %v1460, 0.5
    %v1465 = vmul.f32 %v1462, 0.5
    %v1466 = vmul.f32 %v1460, 0.70710677
    %v1467 = vmul.f32 %v1462, 0.70710677
    %vm1468 = vcmp.ge.f32.partialorder %v1466, 0.0
    %vm1469 = vcmp.ge.f32.partialorder %v1467, 0.0
    %v1470 = vsel %vm1468, 1.0, -1.0
    %v1471 = vsel %vm1469, 1.0, -1.0
    %v1472 = vand.u32 2147483647, %v1466
    %v1473 = vand.u32 2147483647, %v1467
    %v1474 = vmul.f32 %v1472, 0.3275911
    %v1475 = vmul.f32 %v1473, 0.3275911
    %v1476 = vadd.f32 %v1474, 1.0
    %v1477 = vadd.f32 %v1475, 1.0
    %v1478 = vrcp.pop %v1476
    %v1479 = vrcp.pop %v1477
    %v1480 = vmul.f32 %v1476, %v1478
    %v1481 = vmul.f32 %v1477, %v1479
    %v1482 = vsub.f32 2.0, %v1480
    %v1483 = vsub.f32 2.0, %v1481
    %v1484 = vmul.f32 %v1478, %v1482
    %v1485 = vmul.f32 %v1479, %v1483
    %v1486 = vmul.f32 %v1484, 1.0614054
    %v1487 = vmul.f32 %v1485, 1.0614054
    %v1488 = vadd.f32 %v1486, -1.4531521
    %v1489 = vadd.f32 %v1487, -1.4531521
    %v1490 = vmul.f32 %v1488, %v1484
    %v1491 = vmul.f32 %v1489, %v1485
    %v1492 = vadd.f32 %v1490, 1.4214138
    %v1493 = vadd.f32 %v1491, 1.4214138
    %v1494 = vmul.f32 %v1492, %v1484
    %v1495 = vmul.f32 %v1493, %v1485
    %v1496 = vadd.f32 %v1494, -0.28449672
    %v1497 = vadd.f32 %v1495, -0.28449672
    %v1498 = vmul.f32 %v1496, %v1484
    %v1499 = vmul.f32 %v1497, %v1485
    %v1500 = vadd.f32 %v1498, 0.2548296
    %v1501 = vadd.f32 %v1499, 0.2548296
    %v1502 = vmul.f32 %v1500, %v1484
    %v1503 = vmul.f32 %v1501, %v1485
    %v1504 = vsub.f32 0.0, %v1472
    %v1505 = vsub.f32 0.0, %v1473
    %v1506 = vmul.f32 %v1504, %v1472
    %v1507 = vmul.f32 %v1505, %v1473
    %v1508 = vmul.f32 %v1506, 1.442695
    %v1509 = vpow.pop %v1508
    %v1510 = vmul.f32 %v1507, 1.442695
    %v1511 = vpow.pop %v1510
    %v1512 = vmul.f32 %v1502, %v1509
    %v1513 = vmul.f32 %v1503, %v1511
    %v1514 = vsub.f32 1.0, %v1512
    %v1515 = vsub.f32 1.0, %v1513
    %v1516 = vmul.f32 %v1470, %v1514
    %v1517 = vmul.f32 %v1471, %v1515
    %v1518 = vadd.f32 %v1516, 1.0
    %v1519 = vadd.f32 %v1517, 1.0
    %v1520 = vmul.f32 %v1464, %v1518
    %v1521 = vmul.f32 %v1465, %v1519
    %v1522 = vpack.c.bf16 %v1521, %v1520
    %s1523 = scalar_lea.vmem %s11, 32
    %v1524 = vld [vmem:[%s1523] sm:$0xf]
    %v1525 = vld [vmem:[%s1523 + $0x4] sm:$0xf]
    %v1526 = vld [vmem:[%s1523 + $0x8] sm:$0xf]
    %v1527 = vld [vmem:[%s1523 + $0xc] sm:$0xf]
    %s1528 = scalar_lea.vmem %s12, 2
    %v1529 = vld [vmem:[%s1528] sm:$0x1]
    %v1531 = vperm.slane %v1529, 0
    %v1537 = vunpack.c.l.b16 %v1524
    %v1538 = vunpack.c.l.b16 %v1525
    %v1539 = vunpack.c.l.b16 %v1526
    %v1540 = vunpack.c.l.b16 %v1527
    %v1541 = vpack.c.b16 %v1538, %v1537
    %v1542 = vpack.c.b16 %v1540, %v1539
    %v1546 = vsel %vm135, %v1522, 0
    %1548 = vmatpush.bf16.msra.mxu0 0
    %1549 = vmatpush.bf16.msra.mxu0 0
    %1550 = vmatpush.bf16.msra.mxu0 0
    %1551 = vmatpush.bf16.msra.mxu0 0
    %1552 = vmatpush.bf16.msra.mxu0 0
    %1553 = vmatpush.bf16.msra.mxu0 0
    %1554 = vmatpush.bf16.msra.mxu0 %v1542
    %1555 = vmatpush.bf16.msra.mxu0 %v1541
    %1556 = vmatmul.bf16.gmra.mxu0 %v1546
    %v1557 = vpop.f32.mrf.mxu0
    %v1558 = vadd.f32 %v1531, %v1557
    %v1559 = vpop.f32.mrf.mxu0
    %v1560 = vadd.f32 %v1531, %v1559
    %1561 = vdwg.mxu0
    %v1562 = vadd.f32 %v1558, %v1358
    %v1563 = vadd.f32 %v1560, %v1359
    %s1564 = scalar_lea.vmem %s5, 3
    %v1565 = vld [vmem:[%s1564] sm:$0x1]
    %s1566 = scalar_lea.vmem %s6, 3
    %v1567 = vld [vmem:[%s1566] sm:$0x1]
    %v1568 = vsel %vm135, %v1562, 0.0
    %1569 = vadd.xlane.f32.xlu0 %v1568
    %v1570 = vpop.xlane.xlu0 %1569
    %v1571 = vsel %vm135, %v1563, 0.0
    %1572 = vadd.xlane.f32.xlu0 %v1571
    %v1573 = vpop.xlane.xlu0 %1572
    %v1574 = vmul.f32 %v1570, %v154
    %v1575 = vmul.f32 %v1573, %v154
    %v1576 = vmul.f32 %v1562, %v1562
    %v1577 = vmul.f32 %v1563, %v1563
    %v1578 = vsel %vm135, %v1576, 0.0
    %1579 = vadd.xlane.f32.xlu0 %v1578
    %v1580 = vpop.xlane.xlu0 %1579
    %v1581 = vsel %vm135, %v1577, 0.0
    %1582 = vadd.xlane.f32.xlu0 %v1581
    %v1583 = vpop.xlane.xlu0 %1582
    %v1584 = vmul.f32 %v1580, %v154
    %v1585 = vmul.f32 %v1583, %v154
    %v1586 = vmul.f32 %v1574, %v1574
    %v1587 = vmul.f32 %v1575, %v1575
    %v1588 = vsub.f32 %v1584, %v1586
    %v1589 = vsub.f32 %v1585, %v1587
    %v1590 = vmax.f32 %v1588, 0.0
    %v1591 = vmax.f32 %v1589, 0.0
    %v1592 = vsub.f32 %v1562, %v1574
    %v1593 = vsub.f32 %v1563, %v1575
    %v1594 = vadd.f32 %v1590, 1e-05
    %v1595 = vadd.f32 %v1591, 1e-05
    %v1596 = vrsqrt.pop %v1594
    %v1597 = vmul.f32 %v1596, %v1594
    %v1598 = vmul.f32 %v1597, %v1596
    %v1599 = vmul.f32 0.5, %v1598
    %v1600 = vsub.f32 1.5, %v1599
    %v1601 = vmul.f32 %v1596, %v1600
    %vm1602 = vweird.f32 %v1594
    %vm1603 = vweird.f32 %v1596
    %vm1604 = vmor %vm1602, %vm1603
    %v1605 = vsel %vm1604, %v1596, %v1601
    %v1606 = vrsqrt.pop %v1595
    %v1607 = vmul.f32 %v1606, %v1595
    %v1608 = vmul.f32 %v1607, %v1606
    %v1609 = vmul.f32 0.5, %v1608
    %v1610 = vsub.f32 1.5, %v1609
    %v1611 = vmul.f32 %v1606, %v1610
    %vm1612 = vweird.f32 %v1595
    %vm1613 = vweird.f32 %v1606
    %vm1614 = vmor %vm1612, %vm1613
    %v1615 = vsel %vm1614, %v1606, %v1611
    %v1616 = vmul.f32 %v1592, %v1605
    %v1617 = vmul.f32 %v1593, %v1615
    %v1619 = vperm.slane %v1565, 0
    %v1621 = vmul.f32 %v1616, %v1619
    %v1622 = vmul.f32 %v1617, %v1619
    %v1624 = vperm.slane %v1567, 0
    %v1626 = vadd.f32 %v1621, %v1624
    %v1627 = vadd.f32 %v1622, %v1624
    %v1628 = vadd.f32 %v1626, %v1562
    %v1629 = vadd.f32 %v1627, %v1563
    %s1630 = scalar_lea.vmem %s7, 3
    %v1631 = vld [vmem:[%s1630] sm:$0x1]
    %s1632 = scalar_lea.vmem %s8, 3
    %v1633 = vld [vmem:[%s1632] sm:$0x1]
    %v1634 = vsel %vm135, %v1628, 0.0
    %1635 = vadd.xlane.f32.xlu0 %v1634
    %v1636 = vpop.xlane.xlu0 %1635
    %v1637 = vsel %vm135, %v1629, 0.0
    %1638 = vadd.xlane.f32.xlu0 %v1637
    %v1639 = vpop.xlane.xlu0 %1638
    %v1640 = vmul.f32 %v1636, %v154
    %v1641 = vmul.f32 %v1639, %v154
    %v1642 = vmul.f32 %v1628, %v1628
    %v1643 = vmul.f32 %v1629, %v1629
    %v1644 = vsel %vm135, %v1642, 0.0
    %1645 = vadd.xlane.f32.xlu0 %v1644
    %v1646 = vpop.xlane.xlu0 %1645
    %v1647 = vsel %vm135, %v1643, 0.0
    %1648 = vadd.xlane.f32.xlu0 %v1647
    %v1649 = vpop.xlane.xlu0 %1648
    %v1650 = vmul.f32 %v1646, %v154
    %v1651 = vmul.f32 %v1649, %v154
    %v1652 = vmul.f32 %v1640, %v1640
    %v1653 = vmul.f32 %v1641, %v1641
    %v1654 = vsub.f32 %v1650, %v1652
    %v1655 = vsub.f32 %v1651, %v1653
    %v1656 = vmax.f32 %v1654, 0.0
    %v1657 = vmax.f32 %v1655, 0.0
    %v1658 = vsub.f32 %v1628, %v1640
    %v1659 = vsub.f32 %v1629, %v1641
    %v1660 = vadd.f32 %v1656, 1e-05
    %v1661 = vadd.f32 %v1657, 1e-05
    %v1662 = vrsqrt.pop %v1660
    %v1663 = vmul.f32 %v1662, %v1660
    %v1664 = vmul.f32 %v1663, %v1662
    %v1665 = vmul.f32 0.5, %v1664
    %v1666 = vsub.f32 1.5, %v1665
    %v1667 = vmul.f32 %v1662, %v1666
    %vm1668 = vweird.f32 %v1660
    %vm1669 = vweird.f32 %v1662
    %vm1670 = vmor %vm1668, %vm1669
    %v1671 = vsel %vm1670, %v1662, %v1667
    %v1672 = vrsqrt.pop %v1661
    %v1673 = vmul.f32 %v1672, %v1661
    %v1674 = vmul.f32 %v1673, %v1672
    %v1675 = vmul.f32 0.5, %v1674
    %v1676 = vsub.f32 1.5, %v1675
    %v1677 = vmul.f32 %v1672, %v1676
    %vm1678 = vweird.f32 %v1661
    %vm1679 = vweird.f32 %v1672
    %vm1680 = vmor %vm1678, %vm1679
    %v1681 = vsel %vm1680, %v1672, %v1677
    %v1682 = vmul.f32 %v1658, %v1671
    %v1683 = vmul.f32 %v1659, %v1681
    %v1685 = vperm.slane %v1631, 0
    %v1687 = vmul.f32 %v1682, %v1685
    %v1688 = vmul.f32 %v1683, %v1685
    %v1690 = vperm.slane %v1633, 0
    %v1692 = vadd.f32 %v1687, %v1690
    %v1693 = vadd.f32 %v1688, %v1690
    %v1694 = vpack.c.bf16 %v1693, %v1692
    %s1695 = scalar_lea.vmem %s9, 48
    %v1696 = vld [vmem:[%s1695] sm:$0xf]
    %v1697 = vld [vmem:[%s1695 + $0x4] sm:$0xf]
    %v1698 = vld [vmem:[%s1695 + $0x8] sm:$0xf]
    %v1699 = vld [vmem:[%s1695 + $0xc] sm:$0xf]
    %s1700 = scalar_lea.vmem %s10, 3
    %v1701 = vld [vmem:[%s1700] sm:$0x1]
    %v1703 = vperm.slane %v1701, 0
    %v1709 = vunpack.c.l.b16 %v1696
    %v1710 = vunpack.c.l.b16 %v1697
    %v1711 = vunpack.c.l.b16 %v1698
    %v1712 = vunpack.c.l.b16 %v1699
    %v1713 = vpack.c.b16 %v1710, %v1709
    %v1714 = vpack.c.b16 %v1712, %v1711
    %v1718 = vsel %vm135, %v1694, 0
    %1720 = vmatpush.bf16.msra.mxu0 0
    %1721 = vmatpush.bf16.msra.mxu0 0
    %1722 = vmatpush.bf16.msra.mxu0 0
    %1723 = vmatpush.bf16.msra.mxu0 0
    %1724 = vmatpush.bf16.msra.mxu0 0
    %1725 = vmatpush.bf16.msra.mxu0 0
    %1726 = vmatpush.bf16.msra.mxu0 %v1714
    %1727 = vmatpush.bf16.msra.mxu0 %v1713
    %1728 = vmatmul.bf16.gmra.mxu0 %v1718
    %v1729 = vpop.f32.mrf.mxu0
    %v1730 = vadd.f32 %v1703, %v1729
    %v1731 = vpop.f32.mrf.mxu0
    %v1732 = vadd.f32 %v1703, %v1731
    %1733 = vdwg.mxu0
    %v1734 = vmul.f32 %v1730, 0.5
    %v1735 = vmul.f32 %v1732, 0.5
    %v1736 = vmul.f32 %v1730, 0.70710677
    %v1737 = vmul.f32 %v1732, 0.70710677
    %vm1738 = vcmp.ge.f32.partialorder %v1736, 0.0
    %vm1739 = vcmp.ge.f32.partialorder %v1737, 0.0
    %v1740 = vsel %vm1738, 1.0, -1.0
    %v1741 = vsel %vm1739, 1.0, -1.0
    %v1742 = vand.u32 2147483647, %v1736
    %v1743 = vand.u32 2147483647, %v1737
    %v1744 = vmul.f32 %v1742, 0.3275911
    %v1745 = vmul.f32 %v1743, 0.3275911
    %v1746 = vadd.f32 %v1744, 1.0
    %v1747 = vadd.f32 %v1745, 1.0
    %v1748 = vrcp.pop %v1746
    %v1749 = vrcp.pop %v1747
    %v1750 = vmul.f32 %v1746, %v1748
    %v1751 = vmul.f32 %v1747, %v1749
    %v1752 = vsub.f32 2.0, %v1750
    %v1753 = vsub.f32 2.0, %v1751
    %v1754 = vmul.f32 %v1748, %v1752
    %v1755 = vmul.f32 %v1749, %v1753
    %v1756 = vmul.f32 %v1754, 1.0614054
    %v1757 = vmul.f32 %v1755, 1.0614054
    %v1758 = vadd.f32 %v1756, -1.4531521
    %v1759 = vadd.f32 %v1757, -1.4531521
    %v1760 = vmul.f32 %v1758, %v1754
    %v1761 = vmul.f32 %v1759, %v1755
    %v1762 = vadd.f32 %v1760, 1.4214138
    %v1763 = vadd.f32 %v1761, 1.4214138
    %v1764 = vmul.f32 %v1762, %v1754
    %v1765 = vmul.f32 %v1763, %v1755
    %v1766 = vadd.f32 %v1764, -0.28449672
    %v1767 = vadd.f32 %v1765, -0.28449672
    %v1768 = vmul.f32 %v1766, %v1754
    %v1769 = vmul.f32 %v1767, %v1755
    %v1770 = vadd.f32 %v1768, 0.2548296
    %v1771 = vadd.f32 %v1769, 0.2548296
    %v1772 = vmul.f32 %v1770, %v1754
    %v1773 = vmul.f32 %v1771, %v1755
    %v1774 = vsub.f32 0.0, %v1742
    %v1775 = vsub.f32 0.0, %v1743
    %v1776 = vmul.f32 %v1774, %v1742
    %v1777 = vmul.f32 %v1775, %v1743
    %v1778 = vmul.f32 %v1776, 1.442695
    %v1779 = vpow.pop %v1778
    %v1780 = vmul.f32 %v1777, 1.442695
    %v1781 = vpow.pop %v1780
    %v1782 = vmul.f32 %v1772, %v1779
    %v1783 = vmul.f32 %v1773, %v1781
    %v1784 = vsub.f32 1.0, %v1782
    %v1785 = vsub.f32 1.0, %v1783
    %v1786 = vmul.f32 %v1740, %v1784
    %v1787 = vmul.f32 %v1741, %v1785
    %v1788 = vadd.f32 %v1786, 1.0
    %v1789 = vadd.f32 %v1787, 1.0
    %v1790 = vmul.f32 %v1734, %v1788
    %v1791 = vmul.f32 %v1735, %v1789
    %v1792 = vpack.c.bf16 %v1791, %v1790
    %s1793 = scalar_lea.vmem %s11, 48
    %v1794 = vld [vmem:[%s1793] sm:$0xf]
    %v1795 = vld [vmem:[%s1793 + $0x4] sm:$0xf]
    %v1796 = vld [vmem:[%s1793 + $0x8] sm:$0xf]
    %v1797 = vld [vmem:[%s1793 + $0xc] sm:$0xf]
    %s1798 = scalar_lea.vmem %s12, 3
    %v1799 = vld [vmem:[%s1798] sm:$0x1]
    %v1801 = vperm.slane %v1799, 0
    %v1807 = vunpack.c.l.b16 %v1794
    %v1808 = vunpack.c.l.b16 %v1795
    %v1809 = vunpack.c.l.b16 %v1796
    %v1810 = vunpack.c.l.b16 %v1797
    %v1811 = vpack.c.b16 %v1808, %v1807
    %v1812 = vpack.c.b16 %v1810, %v1809
    %v1816 = vsel %vm135, %v1792, 0
    %1818 = vmatpush.bf16.msra.mxu0 0
    %1819 = vmatpush.bf16.msra.mxu0 0
    %1820 = vmatpush.bf16.msra.mxu0 0
    %1821 = vmatpush.bf16.msra.mxu0 0
    %1822 = vmatpush.bf16.msra.mxu0 0
    %1823 = vmatpush.bf16.msra.mxu0 0
    %1824 = vmatpush.bf16.msra.mxu0 %v1812
    %1825 = vmatpush.bf16.msra.mxu0 %v1811
    %1826 = vmatmul.bf16.gmra.mxu0 %v1816
    %v1827 = vpop.f32.mrf.mxu0
    %v1828 = vadd.f32 %v1801, %v1827
    %v1829 = vpop.f32.mrf.mxu0
    %v1830 = vadd.f32 %v1801, %v1829
    %1831 = vdwg.mxu0
    %v1832 = vadd.f32 %v1828, %v1628
    %v1833 = vadd.f32 %v1830, %v1629
    %v1835 = vrot.slane %v1832, 4
    %1836 = vrot.lane.b32.xlu0 %v1835, 32
    %v1837 = vpop.permute.xlu0 %1836
    %v1839 = vsel %vm135, %v1832, %v1837
    %v1841 = vrot.slane %v1833, 4
    %1842 = vrot.lane.b32.xlu0 %v1841, 32
    %v1843 = vpop.permute.xlu0 %1842
    %v1845 = vsel %vm135, %v1833, %v1843
    %v1847 = vrot.slane %v1845, 4
    %vm1849 = vcmask 1043456
    %v1850 = vsel %vm1849, %v1839, %v1847
    %v1851 = vsel %vm101, %v1850, 0.0
    %1852 = vadd.xlane.f32.xlu0 %v1851
    %v1853 = vpop.xlane.xlu0 %1852
    %v1854 = vmul.f32 %v1853, %v1189
    %v1855 = vmul.f32 %v1850, %v1850
    %v1856 = vsel %vm101, %v1855, 0.0
    %1857 = vadd.xlane.f32.xlu0 %v1856
    %v1858 = vpop.xlane.xlu0 %1857
    %v1859 = vmul.f32 %v1858, %v1189
    %v1860 = vmul.f32 %v1854, %v1854
    %v1861 = vsub.f32 %v1859, %v1860
    %v1862 = vmax.f32 %v1861, 0.0
    %v1863 = vsub.f32 %v1850, %v1854
    %v1864 = vadd.f32 %v1862, 1e-05
    %v1865 = vrsqrt.pop %v1864
    %v1866 = vmul.f32 %v1865, %v1864
    %v1867 = vmul.f32 %v1866, %v1865
    %v1868 = vmul.f32 0.5, %v1867
    %v1869 = vsub.f32 1.5, %v1868
    %v1870 = vmul.f32 %v1865, %v1869
    %vm1871 = vweird.f32 %v1864
    %vm1872 = vweird.f32 %v1865
    %vm1873 = vmor %vm1871, %vm1872
    %v1874 = vsel %vm1873, %v1865, %v1870
    %v1875 = vmul.f32 %v1863, %v1874
    %v1876 = vmul.f32 %v1875, %v1235
    %v1877 = vadd.f32 %v1876, %v1240
    %v1878 = vpack.c.bf16 %v1877, %v1877
    %v1880 = vsel %vm101, %v1878, 0
    %1882 = vmatpush.bf16.msra.mxu0 0
    %1883 = vmatpush.bf16.msra.mxu0 0
    %1884 = vmatpush.bf16.msra.mxu0 0
    %1885 = vmatpush.bf16.msra.mxu0 0
    %1886 = vmatpush.bf16.msra.mxu0 %v1272
    %1887 = vmatpush.bf16.msra.mxu0 %v1271
    %1888 = vmatpush.bf16.msra.mxu0 %v1270
    %1889 = vmatpush.bf16.msra.mxu0 %v1269
    %1890 = vmatmul.bf16.gmra.mxu0 %v1880
    %v1891 = vpop.f32.mrf.mxu0
    %v1892 = vadd.f32 0.0, %v1891
    %v1893 = vpop.f32.mrf.mxu0
    %1894 = vdwg.mxu0
    %1895 = vst.msk [vmem:[#allocation2] sm:$0xff] %vm135, %v1892
    // Predicated region
    $region66: #{_lambda_.1} parent=1 // pred_check
      _
    $region67: #{_lambda_.1} parent=1 // pred_check_branch
      %1897 = sbr.rel (0) target = $region69
    $region68: #{_lambda_.1} parent=1 // pred_region
      %1899 = vsyncadd [#allocation3], 0
      %s1901 = sshll.u32 [#allocation2], 4
      %s1902 = int_to_ptr.vmem [resolvable:$true] %s1901
      %s1903 = sshll.u32 %s16, 4
      %s1904 = int_to_ptr.hbm [resolvable:$true] %s1903
      %1906 = dma.vmem_to_hbm [thread:$0]  %s1902, 128, %s1904, [#allocation3]
    $region69: #{_lambda_.1} parent=1 // pred_fallthru
      _
    // Predicated region
    $region70: #{_lambda_.1} parent=1 // pred_check
      _
    $region71: #{_lambda_.1} parent=1 // pred_check_branch
      %1908 = sbr.rel (0) target = $region73
    $region72: #{_lambda_.1} parent=1 // pred_region
      %1910 = dma.done [#allocation3], 128
    $region73: #{_lambda_.1} parent=1 // pred_fallthru
      _
    %1911 = vsyncpa [#allocation3], 1

</llo_original>
